<compile_context>
chip_gen: v7x
topology: tpu7x:2x2x1
jax: 0.10.0
libtpu: 0.0.40
codegen_flags: <defaults>
</compile_context>

<pallas_src>
import jax
import jax.numpy as jnp
from jax.experimental import pallas as pl
from jax.experimental.pallas import tpu as pltpu


_LANE_CANDIDATES = (4096, 2048, 1024, 512, 256, 128)
_BLOCK_BUDGET_BYTES = 4 << 20       # per array per block; 3 arrays x 2 bufs ~= 24 MiB
_VMEM_LIMIT_BYTES = 32 << 20        # safe on v5e/v6e (128 MiB) and v7x (64 MiB)
_SMALL_INPUT_ELEMS = 1 << 17        # below ~128K elems XLA's fused add+relu wins
_FORCE_SPLIT_BYTES = 2 << 20        # per array: above this, always emit >= 2 grid steps


def _add_relu_kernel(a_ref, b_ref, o_ref):
    # VPU elementwise hot path: add + ReLU on one (tile_rows, lane) block.
    s = a_ref[...] + b_ref[...]
    o_ref[...] = jnp.maximum(s, jnp.zeros_like(s))


def _min_grid_steps(bytes_per_array):
    """>= 2 grid steps keeps both TensorCores busy on dual-core chips (v7x/v4/v5p)."""
    steps = 1
    try:
        dev = jax.devices()[0]
        kind = str(getattr(dev, "device_kind", "")).lower()
        if getattr(dev, "platform", "") == "tpu" and any(
            tag in kind for tag in ("v4", "v5p", "v7")
        ):
            steps = 2
    except Exception:
        pass
    if bytes_per_array >= _FORCE_SPLIT_BYTES:
        # One extra ~0.35us grid step is <5% at this size; cheap insurance for 2-TC chips.
        steps = max(steps, 2)
    return steps


def _choose_layout(n_elems, itemsize, min_steps):
    """Pick (lane, rows, tile_rows). Requires n_elems % 128 == 0; needs no padding.

    Lane = widest multiple of 128 dividing n_elems (lane-dense, unmasked stores).
    tile_rows = ~4 MiB per block, capped so the grid has >= min_steps roughly balanced
    steps; last block may be partial (masked) since the grid uses pl.cdiv.
    """
    sub = max(8, 8 * (4 // max(1, itemsize)))   # 8 (f32), 16 (bf16), 32 (int8)
    lane = 0
    for cand in _LANE_CANDIDATES:
        if n_elems % cand == 0:
            lane = cand
            break
    if lane == 0:
        return None
    rows = n_elems // lane
    row_bytes = lane * itemsize
    budget_rows = max(sub, (_BLOCK_BUDGET_BYTES // row_bytes) // sub * sub)
    if min_steps <= 1 or rows <= sub:
        # Fewest steps: one full block if it fits, else budget-sized tiles.
        tile_rows = rows if rows <= budget_rows else budget_rows
    else:
        # ~rows/min_steps rounded up to the sublane multiple -> balanced split.
        balanced = pl.cdiv(pl.cdiv(rows, min_steps), sub) * sub
        tile_rows = min(budget_rows, balanced)
    return lane, rows, tile_rows


def _add_relu_2d(a2, b2, tile_rows, lane, dtype):
    rows = a2.shape[0]
    grid = (pl.cdiv(rows, tile_rows),)
    return pl.pallas_call(
        _add_relu_kernel,
        out_shape=jax.ShapeDtypeStruct((rows, lane), dtype),
        grid=grid,
        in_specs=[
            pl.BlockSpec((tile_rows, lane), lambda i: (i, 0)),
            pl.BlockSpec((tile_rows, lane), lambda i: (i, 0)),
        ],
        out_specs=pl.BlockSpec((tile_rows, lane), lambda i: (i, 0)),
        compiler_params=pltpu.CompilerParams(
            dimension_semantics=("parallel",),
            vmem_limit_bytes=_VMEM_LIMIT_BYTES,
        ),
    )(a2, b2)


def add_relu(x110, x102):
    assert x110.shape == x102.shape and x110.dtype == x102.dtype
    orig_shape = x110.shape
    dtype = x110.dtype
    itemsize = jnp.dtype(dtype).itemsize
    n_elems = 1
    for d in orig_shape:
        n_elems *= d

    # Small inputs (launch + reshape overhead dominates) and awkward element counts
    # (not a multiple of 128, would need padding passes): XLA's fused add+relu is
    # already at the HBM roofline with zero extra passes.
    if n_elems < _SMALL_INPUT_ELEMS or n_elems % 128 != 0:
        return jnp.maximum(x110 + x102, 0)

    min_steps = _min_grid_steps(n_elems * itemsize)
    layout = _choose_layout(n_elems, itemsize, min_steps)
    if layout is None:  # unreachable given the %128 check; keep a safe path anyway
        return jnp.maximum(x110 + x102, 0)

    lane, rows, tile_rows = layout
    a2 = x110.reshape(rows, lane)   # pure reshape of a contiguous array: no copy, no pad
    b2 = x102.reshape(rows, lane)
    out = _add_relu_2d(a2, b2, tile_rows, lane, dtype)
    return out.reshape(orig_shape)


if __name__ == "__main__":
    key = jax.random.PRNGKey(0)
    k1, k2, k3, k4 = jax.random.split(key, 4)

    # The module's actual shape (1, 1024, 28, 28): exercises the Pallas main path
    # (lane=4096, two ~1.7 MiB row tiles -> both TensorCores on v7x).
    x110 = jax.random.normal(k1, (1, 1024, 28, 28), dtype=jnp.float32)
    x102 = jax.random.normal(k2, (1, 1024, 28, 28), dtype=jnp.float32)
    out = jax.block_until_ready(add_relu(x110, x102))
    ref = jnp.maximum(x110 + x102, 0.0)
    assert out.shape == ref.shape and out.dtype == ref.dtype
    assert jnp.allclose(out, ref, atol=1e-6), "mismatch vs reference (module shape)"

    # Scaled-down shape: routed to the fused-XLA small-input path.
    y110 = jax.random.normal(k3, (2, 4, 16, 16), dtype=jnp.float32)
    y102 = jax.random.normal(k4, (2, 4, 16, 16), dtype=jnp.float32)
    out2 = jax.block_until_ready(add_relu(y110, y102))
    ref2 = jnp.maximum(y110 + y102, 0.0)
    assert out2.shape == ref2.shape and out2.dtype == ref2.dtype
    assert jnp.allclose(out2, ref2, atol=1e-6), "mismatch vs reference (small shape)"

    print("KERNEL_OK")
</pallas_src>

<mosaic_0001>
module attributes {stable_mosaic.version = 11 : i64} {
  func.func @_add_relu_kernel(%arg0: i32, %arg1: memref<104x4096xf32, #tpu.memory_space<vmem>>, %arg2: memref<104x4096xf32, #tpu.memory_space<vmem>>, %arg3: memref<104x4096xf32, #tpu.memory_space<vmem>>) attributes {dimension_semantics = [#tpu.dimension_semantics<parallel>], iteration_bounds = array<i64: 2>, scalar_prefetch = 0 : i64, scratch_operands = 0 : i64, tpu.core_type = #tpu.core_type<tc>, window_params = [{transform_indices = @transform_0, window_bounds = array<i64: 104, 4096>}, {transform_indices = @transform_1, window_bounds = array<i64: 104, 4096>}, {transform_indices = @transform_2, window_bounds = array<i64: 104, 4096>}]} {
    %c0 = arith.constant 0 : index
    %c0_0 = arith.constant 0 : index
    %0 = vector.load %arg1[%c0, %c0_0] : memref<104x4096xf32, #tpu.memory_space<vmem>>, vector<104x4096xf32>
    %c0_1 = arith.constant 0 : index
    %c0_2 = arith.constant 0 : index
    %1 = vector.load %arg2[%c0_1, %c0_2] : memref<104x4096xf32, #tpu.memory_space<vmem>>, vector<104x4096xf32>
    %2 = arith.addf %0, %1 : vector<104x4096xf32>
    %cst = arith.constant 0.000000e+00 : f32
    %3 = vector.broadcast %cst : f32 to vector<104x4096xf32>
    %4 = arith.maximumf %2, %3 : vector<104x4096xf32>
    %c0_3 = arith.constant 0 : index
    %c0_4 = arith.constant 0 : index
    %5 = vector.load %arg3[%c0_3, %c0_4] : memref<104x4096xf32, #tpu.memory_space<vmem>>, vector<104x4096xf32>
    tpu.vector_store %arg3[%c0_3, %c0_4], %4 {strides = array<i32>} : memref<104x4096xf32, #tpu.memory_space<vmem>>, vector<104x4096xf32>,
    return
  }
  func.func @transform_0(%arg0: i32) -> (i32, i32) {
    %c0_i32 = arith.constant 0 : i32
    %c0_i32_0 = arith.constant 0 : i32
    return %arg0, %c0_i32 : i32, i32
  }
  func.func @transform_1(%arg0: i32) -> (i32, i32) {
    %c0_i32 = arith.constant 0 : i32
    %c0_i32_0 = arith.constant 0 : i32
    return %arg0, %c0_i32 : i32, i32
  }
  func.func @transform_2(%arg0: i32) -> (i32, i32) {
    %c0_i32 = arith.constant 0 : i32
    %c0_i32_0 = arith.constant 0 : i32
    return %arg0, %c0_i32 : i32, i32
  }
}

</mosaic_0001>

<llo_original>
// kernel: tpu_custom_call.1
$region0: #{tpu_custom_call.1}
  #allocation0 [shape = 'u32[]', space=smem, size = 0x4, offset = 0x4, fixed_abs, tag = 'smem constant byte address 0x4 - core index']
  #allocation1 [shape = 'u32[144,128]{1,0:T(1,128)}', space=vmem, size = 0x12000, scoped, tag = 'internal scratch']
  %s0 = inlined_call_operand.hbm [shape: f32[196,4096], index: 0, kind: input, shape index: {}]
  %s1 = inlined_call_operand.hbm [shape: f32[196,4096], index: 1, kind: input, shape index: {}]
  %s2 = inlined_call_operand.hbm [shape: f32[196,4096], index: 2, kind: output, shape index: {}]
  %s3 = sld [smem:[#allocation0]]
  $region49: #{tpu_custom_call.1} parent=0
    _
  %s5 = ssub.s32 1, %s3
  %s6 = scalar_select 0, %s5, %s3
  $region1: #{tpu_custom_call.1} parent=0
    #allocation2 [shape = 'u8[3407872]{0}', space=vmem, size = 0x340000, scoped, tag = 'input window, operand 0']
    #allocation3 [shape = 's32[2]{0}', space=sflag, size = 0x8, scoped, tag = 'scoped memory for tpu_custom_call.1']
    #allocation4 [shape = 's32[2]{0}', space=sflag, size = 0x8, scoped, tag = 'scoped memory for tpu_custom_call.1']
    #allocation5 [shape = 'u8[3407872]{0}', space=vmem, size = 0x340000, scoped, tag = 'input window, operand 1']
    #allocation6 [shape = 's32[2]{0}', space=sflag, size = 0x8, scoped, tag = 'scoped memory for tpu_custom_call.1']
    #allocation7 [shape = 'u8[3407872]{0}', space=vmem, size = 0x340000, scoped, tag = 'output window, operand 0']
    %7 = vsyncpa [#allocation3], 0
    %s8 = scalar_lea.sflag [#allocation3], 1
    %9 = vsyncpa %s8, 0
    %10 = vsyncpa [#allocation6], 0
    %s11 = scalar_lea.sflag [#allocation6], 1
    %12 = vsyncpa %s11, 0
    %13 = vsyncpa [#allocation4], 0
    %s14 = scalar_lea.sflag [#allocation4], 1
    %15 = vsyncpa %s14, 0
    loop: start=0, step=1, limit=4
    $region2: #{tpu_custom_call.1} parent=1 // loop_pre_header
      _
    $region3: #{tpu_custom_call.1} parent=1 // loop_header
      %s17 = sphi 0, %s21
      %p18 = scmp.ge.s32.totalorder %s17, 4
      %s27 = sphi 0, %s29
      %s30 = sphi 0, %s27
      %s31 = sphi 0, %s30
      %s47 = sphi 0, %s31
      %s53 = sphi 0, %s55
      %s56 = sphi 0, %s53
      %s57 = sphi 0, %s56
      %s73 = sphi 0, %s57
      %s79 = sphi 0, %s81
      %s82 = sphi 0, %s79
      %s83 = sphi 0, %s82
      %s99 = sphi 0, %s83
    $region4: #{tpu_custom_call.1} parent=1 // loop_header_branch
      %20 = sbr.rel (%p18) target = $region8
    $region5: #{tpu_custom_call.1} parent=1 // loop_body
      %s22 = ssub.s32 %s17, 1
      %s23 = ssub.s32 %s17, 2
      %s24 = sadd.s32 %s17, 1
      %s25 = ssub.s32 %s17, %s24
      %p26 = scmp.eq.s32.totalorder %s25, 0
      %s28 = sadd.s32 %s27, 1
      %s29 = scalar_select %p26, %s27, %s28
      %p32 = pneg %p26
      %p33 = scmp.eq.s32.totalorder %s17, 1
      %p34 = por %p32, %p33
      %p35 = scmp.ne.s32.totalorder %s27, %s30
      %p36 = scmp.eq.s32.totalorder %s17, 0
      %p37 = por %p35, %p36
      %p38 = scmp.ne.s32.totalorder %s27, %s30
      %p39 = scmp.eq.s32.totalorder %s22, 1
      %p40 = por %p38, %p39
      %p41 = scmp.ne.s32.totalorder %s30, %s31
      %p42 = scmp.eq.s32.totalorder %s22, 0
      %p43 = por %p41, %p42
      %p44 = scmp.ne.s32.totalorder %s30, %s31
      %p45 = scmp.eq.s32.totalorder %s23, 1
      %p46 = por %p44, %p45
      %p48 = scmp.ne.s32.totalorder %s31, %s47
      %p49 = scmp.eq.s32.totalorder %s23, 0
      %p50 = por %p48, %p49
      %s51 = ssub.s32 %s17, %s24
      %p52 = scmp.eq.s32.totalorder %s51, 0
      %s54 = sadd.s32 %s53, 1
      %s55 = scalar_select %p52, %s53, %s54
      %p58 = pneg %p52
      %p59 = scmp.eq.s32.totalorder %s17, 1
      %p60 = por %p58, %p59
      %p61 = scmp.ne.s32.totalorder %s53, %s56
      %p62 = scmp.eq.s32.totalorder %s17, 0
      %p63 = por %p61, %p62
      %p64 = scmp.ne.s32.totalorder %s53, %s56
      %p65 = scmp.eq.s32.totalorder %s22, 1
      %p66 = por %p64, %p65
      %p67 = scmp.ne.s32.totalorder %s56, %s57
      %p68 = scmp.eq.s32.totalorder %s22, 0
      %p69 = por %p67, %p68
      %p70 = scmp.ne.s32.totalorder %s56, %s57
      %p71 = scmp.eq.s32.totalorder %s23, 1
      %p72 = por %p70, %p71
      %p74 = scmp.ne.s32.totalorder %s57, %s73
      %p75 = scmp.eq.s32.totalorder %s23, 0
      %p76 = por %p74, %p75
      %s77 = ssub.s32 %s17, %s24
      %p78 = scmp.eq.s32.totalorder %s77, 0
      %s80 = sadd.s32 %s79, 1
      %s81 = scalar_select %p78, %s79, %s80
      %p84 = pneg %p78
      %p85 = scmp.eq.s32.totalorder %s17, 1
      %p86 = por %p84, %p85
      %p87 = scmp.ne.s32.totalorder %s79, %s82
      %p88 = scmp.eq.s32.totalorder %s17, 0
      %p89 = por %p87, %p88
      %p90 = scmp.ne.s32.totalorder %s79, %s82
      %p91 = scmp.eq.s32.totalorder %s22, 1
      %p92 = por %p90, %p91
      %p93 = scmp.ne.s32.totalorder %s82, %s83
      %p94 = scmp.eq.s32.totalorder %s22, 0
      %p95 = por %p93, %p94
      %p96 = scmp.ne.s32.totalorder %s82, %s83
      %p97 = scmp.eq.s32.totalorder %s23, 1
      %p98 = por %p96, %p97
      %p100 = scmp.ne.s32.totalorder %s83, %s99
      %p101 = scmp.eq.s32.totalorder %s23, 0
      %p102 = por %p100, %p101
      %p103 = scmp.le.s32.totalorder 1, %s17
      %p104 = scmp.lt.s32.totalorder %s17, 3
      %p105 = pnand %p103, %p104
      %p106 = pneg %p105
      // Predicated region
      $region9: #{tpu_custom_call.1} parent=5 // pred_check
        _
      $region10: #{tpu_custom_call.1} parent=5 // pred_check_branch
        %108 = sbr.rel (%p105) target = $region12
      $region11: #{tpu_custom_call.1} parent=5 // pred_region
        %s109 = ssub.s32 %s17, 1
      $region12: #{tpu_custom_call.1} parent=5 // pred_fallthru
        _
      %p110 = scmp.lt.s32.totalorder %s17, 2
      // Predicated region
      $region13: #{tpu_custom_call.1} parent=5 // pred_check
        %p111 = pneg %p110
      $region14: #{tpu_custom_call.1} parent=5 // pred_check_branch
        %113 = sbr.rel (%p111) target = $region16
      $region15: #{tpu_custom_call.1} parent=5 // pred_region
        // Predicated region
        $region17: #{tpu_custom_call.1} parent=15 // pred_check
          %p114 = pneg %p37
        $region18: #{tpu_custom_call.1} parent=15 // pred_check_branch
          %116 = sbr.rel (%p114) target = $region20
        $region19: #{tpu_custom_call.1} parent=15 // pred_region
          %s117 = sand.u32 %s27, 1
          %s118 = scalar_lea.sflag [#allocation3], %s117
          %s119 = sand.u32 %s27, 1
          %s120 = smul.addr %s119, 3328
          %s121 = scalar_lea.vmem [#allocation2], %s120
          %s122 = smul.u32 13, %s17
          %s123 = ssub.s32 25, %s122
          %p124 = scmp.lt.s32.totalorder %s123, 13
          %s125 = scalar_select %p124, %s123, 13
          %s126 = smul.u32 128, %s125
          %s127 = smul.u32 %s126, 32
          %s129 = ssub.s32 53248, %s127
          %130 = vsyncadd %s118, %s129
          %p131 = scmp.ne.s32.totalorder 0, %s127
          %s132 = smul.addr %s122, 32
          %s133 = smul.addr %s132, 128
          %s134 = scalar_lea.hbm %s0, %s133
          %s135 = smul.u32 256, %s125
          %s136 = sshll.u32 %s121, 4
          %s137 = int_to_ptr.vmem [resolvable:$true] %s136
          %s138 = sshll.u32 %s135, 4
          %142 = dma.hbm_to_vmem [thread:$0]  (%p131), %s134, %s138, %s137, %s118, 4096, 4096, 256
        $region20: #{tpu_custom_call.1} parent=15 // pred_fallthru
          _
        // Predicated region
        $region21: #{tpu_custom_call.1} parent=15 // pred_check
          %p143 = pneg %p63
        $region22: #{tpu_custom_call.1} parent=15 // pred_check_branch
          %145 = sbr.rel (%p143) target = $region24
        $region23: #{tpu_custom_call.1} parent=15 // pred_region
          %s146 = sand.u32 %s53, 1
          %s147 = scalar_lea.sflag [#allocation6], %s146
          %s148 = sand.u32 %s53, 1
          %s149 = smul.addr %s148, 3328
          %s150 = scalar_lea.vmem [#allocation5], %s149
          %s151 = smul.u32 13, %s17
          %s152 = ssub.s32 25, %s151
          %p153 = scmp.lt.s32.totalorder %s152, 13
          %s154 = scalar_select %p153, %s152, 13
          %s155 = smul.u32 128, %s154
          %s156 = smul.u32 %s155, 32
          %s158 = ssub.s32 53248, %s156
          %159 = vsyncadd %s147, %s158
          %p160 = scmp.ne.s32.totalorder 0, %s156
          %s161 = smul.addr %s151, 32
          %s162 = smul.addr %s161, 128
          %s163 = scalar_lea.hbm %s1, %s162
          %s164 = smul.u32 256, %s154
          %s165 = sshll.u32 %s150, 4
          %s166 = int_to_ptr.vmem [resolvable:$true] %s165
          %s167 = sshll.u32 %s164, 4
          %171 = dma.hbm_to_vmem [thread:$0]  (%p160), %s163, %s167, %s166, %s147, 4096, 4096, 256
        $region24: #{tpu_custom_call.1} parent=15 // pred_fallthru
          _
      $region16: #{tpu_custom_call.1} parent=5 // pred_fallthru
        _
      %p172 = scmp.le.s32.totalorder 1, %s17
      %p173 = scmp.lt.s32.totalorder %s17, 3
      %p174 = pnand %p172, %p173
      %p175 = pneg %p174
      // Predicated region
      $region25: #{tpu_custom_call.1} parent=5 // pred_check
        _
      $region26: #{tpu_custom_call.1} parent=5 // pred_check_branch
        %177 = sbr.rel (%p174) target = $region28
      $region27: #{tpu_custom_call.1} parent=5 // pred_region
        %s178 = ssub.s32 %s17, 1
        %s179 = sand.u32 %s30, 1
        %s180 = scalar_lea.sflag [#allocation3], %s179
        %s181 = sand.u32 %s30, 1
        %s182 = smul.addr %s181, 3328
        %s183 = scalar_lea.vmem [#allocation2], %s182
        // Predicated region
        $region29: #{tpu_custom_call.1} parent=27 // pred_check
          %p184 = pneg %p43
        $region30: #{tpu_custom_call.1} parent=27 // pred_check_branch
          %186 = sbr.rel (%p184) target = $region32
        $region31: #{tpu_custom_call.1} parent=27 // pred_region
          %187 = dma.done %s180, 53248
        $region32: #{tpu_custom_call.1} parent=27 // pred_fallthru
          _
        %s188 = sand.u32 %s56, 1
        %s189 = scalar_lea.sflag [#allocation6], %s188
        %s190 = sand.u32 %s56, 1
        %s191 = smul.addr %s190, 3328
        %s192 = scalar_lea.vmem [#allocation5], %s191
        // Predicated region
        $region33: #{tpu_custom_call.1} parent=27 // pred_check
          %p193 = pneg %p69
        $region34: #{tpu_custom_call.1} parent=27 // pred_check_branch
          %195 = sbr.rel (%p193) target = $region36
        $region35: #{tpu_custom_call.1} parent=27 // pred_region
          %196 = dma.done %s189, 53248
        $region36: #{tpu_custom_call.1} parent=27 // pred_fallthru
          _
        %s197 = sand.u32 %s30, 1
        %s198 = scalar_lea.sflag [#allocation3], %s197
        %s199 = sand.u32 %s30, 1
        %s200 = smul.addr %s199, 3328
        %s201 = scalar_lea.vmem [#allocation2], %s200
        %p202 = pneg %p43
        %p203 = pneg %p40
        %s204 = sand.u32 %s56, 1
        %s205 = scalar_lea.sflag [#allocation6], %s204
        %s206 = sand.u32 %s56, 1
        %s207 = smul.addr %s206, 3328
        %s208 = scalar_lea.vmem [#allocation5], %s207
        %p209 = pneg %p69
        %p210 = pneg %p66
        %p211 = pneg %p95
        %p212 = pneg %p92
        %s213 = sand.u32 %s82, 1
        %s214 = scalar_lea.sflag [#allocation4], %s213
        %s215 = sand.u32 %s82, 1
        %s216 = smul.addr %s215, 3328
        %s217 = scalar_lea.vmem [#allocation7], %s216
        %s218 = smul.u32 13, %s22
        %s219 = ssub.s32 25, %s218
        %p220 = scmp.lt.s32.totalorder %s219, 13
        %s221 = scalar_select %p220, %s219, 13
        %s222 = smul.u32 128, %s221
        %s223 = smul.u32 %s222, 32
        %s224 = smul.u32 13, %s22
        %s225 = ssub.s32 25, %s224
        %p226 = scmp.lt.s32.totalorder %s225, 13
        %s227 = scalar_select %p226, %s225, 13
        %s228 = smul.u32 128, %s227
        %s229 = smul.u32 %s228, 32
        %s230 = smul.u32 13, %s22
        %s231 = ssub.s32 25, %s230
        %p232 = scmp.lt.s32.totalorder %s231, 13
        %s233 = scalar_select %p232, %s231, 13
        %s234 = smul.u32 128, %s233
        %s235 = smul.u32 %s234, 32
        %v236 = vld [vmem:[%s183] sm:$0xff]
        %v237 = vld [vmem:[%s183 + $0x8] sm:$0xff]
        %v238 = vld [vmem:[%s183 + $0x10] sm:$0xff]
        %v239 = vld [vmem:[%s183 + $0x18] sm:$0xff]
        %v240 = vld [vmem:[%s183 + $0x20] sm:$0xff]
        %v241 = vld [vmem:[%s183 + $0x28] sm:$0xff]
        %v242 = vld [vmem:[%s183 + $0x30] sm:$0xff]
        %v243 = vld [vmem:[%s183 + $0x38] sm:$0xff]
        %v244 = vld [vmem:[%s183 + $0x40] sm:$0xff]
        %v245 = vld [vmem:[%s183 + $0x48] sm:$0xff]
        %v246 = vld [vmem:[%s183 + $0x50] sm:$0xff]
        %v247 = vld [vmem:[%s183 + $0x58] sm:$0xff]
        %v248 = vld [vmem:[%s183 + $0x60] sm:$0xff]
        %v249 = vld [vmem:[%s183 + $0x68] sm:$0xff]
        %v250 = vld [vmem:[%s183 + $0x70] sm:$0xff]
        %v251 = vld [vmem:[%s183 + $0x78] sm:$0xff]
        %v252 = vld [vmem:[%s183 + $0x80] sm:$0xff]
        %v253 = vld [vmem:[%s183 + $0x88] sm:$0xff]
        %v254 = vld [vmem:[%s183 + $0x90] sm:$0xff]
        %v255 = vld [vmem:[%s183 + $0x98] sm:$0xff]
        %v256 = vld [vmem:[%s183 + $0xa0] sm:$0xff]
        %v257 = vld [vmem:[%s183 + $0xa8] sm:$0xff]
        %v258 = vld [vmem:[%s183 + $0xb0] sm:$0xff]
        %v259 = vld [vmem:[%s183 + $0xb8] sm:$0xff]
        %v260 = vld [vmem:[%s183 + $0xc0] sm:$0xff]
        %v261 = vld [vmem:[%s183 + $0xc8] sm:$0xff]
        %v262 = vld [vmem:[%s183 + $0xd0] sm:$0xff]
        %v263 = vld [vmem:[%s183 + $0xd8] sm:$0xff]
        %v264 = vld [vmem:[%s183 + $0xe0] sm:$0xff]
        %v265 = vld [vmem:[%s183 + $0xe8] sm:$0xff]
        %v266 = vld [vmem:[%s183 + $0xf0] sm:$0xff]
        %v267 = vld [vmem:[%s183 + $0xf8] sm:$0xff]
        %v268 = vld [vmem:[%s183 + $0x100] sm:$0xff]
        %v269 = vld [vmem:[%s183 + $0x108] sm:$0xff]
        %v270 = vld [vmem:[%s183 + $0x110] sm:$0xff]
        %v271 = vld [vmem:[%s183 + $0x118] sm:$0xff]
        %v272 = vld [vmem:[%s183 + $0x120] sm:$0xff]
        %v273 = vld [vmem:[%s183 + $0x128] sm:$0xff]
        %v274 = vld [vmem:[%s183 + $0x130] sm:$0xff]
        %v275 = vld [vmem:[%s183 + $0x138] sm:$0xff]
        %v276 = vld [vmem:[%s183 + $0x140] sm:$0xff]
        %v277 = vld [vmem:[%s183 + $0x148] sm:$0xff]
        %v278 = vld [vmem:[%s183 + $0x150] sm:$0xff]
        %v279 = vld [vmem:[%s183 + $0x158] sm:$0xff]
        %v280 = vld [vmem:[%s183 + $0x160] sm:$0xff]
        %v281 = vld [vmem:[%s183 + $0x168] sm:$0xff]
        %v282 = vld [vmem:[%s183 + $0x170] sm:$0xff]
        %v283 = vld [vmem:[%s183 + $0x178] sm:$0xff]
        %v284 = vld [vmem:[%s183 + $0x180] sm:$0xff]
        %v285 = vld [vmem:[%s183 + $0x188] sm:$0xff]
        %v286 = vld [vmem:[%s183 + $0x190] sm:$0xff]
        %v287 = vld [vmem:[%s183 + $0x198] sm:$0xff]
        %v288 = vld [vmem:[%s183 + $0x1a0] sm:$0xff]
        %v289 = vld [vmem:[%s183 + $0x1a8] sm:$0xff]
        %v290 = vld [vmem:[%s183 + $0x1b0] sm:$0xff]
        %v291 = vld [vmem:[%s183 + $0x1b8] sm:$0xff]
        %v292 = vld [vmem:[%s183 + $0x1c0] sm:$0xff]
        %v293 = vld [vmem:[%s183 + $0x1c8] sm:$0xff]
        %v294 = vld [vmem:[%s183 + $0x1d0] sm:$0xff]
        %v295 = vld [vmem:[%s183 + $0x1d8] sm:$0xff]
        %v296 = vld [vmem:[%s183 + $0x1e0] sm:$0xff]
        %v297 = vld [vmem:[%s183 + $0x1e8] sm:$0xff]
        %v298 = vld [vmem:[%s183 + $0x1f0] sm:$0xff]
        %v299 = vld [vmem:[%s183 + $0x1f8] sm:$0xff]
        %v300 = vld [vmem:[%s183 + $0x200] sm:$0xff]
        %v301 = vld [vmem:[%s183 + $0x208] sm:$0xff]
        %v302 = vld [vmem:[%s183 + $0x210] sm:$0xff]
        %v303 = vld [vmem:[%s183 + $0x218] sm:$0xff]
        %v304 = vld [vmem:[%s183 + $0x220] sm:$0xff]
        %v305 = vld [vmem:[%s183 + $0x228] sm:$0xff]
        %v306 = vld [vmem:[%s183 + $0x230] sm:$0xff]
        %v307 = vld [vmem:[%s183 + $0x238] sm:$0xff]
        %v308 = vld [vmem:[%s183 + $0x240] sm:$0xff]
        %v309 = vld [vmem:[%s183 + $0x248] sm:$0xff]
        %v310 = vld [vmem:[%s183 + $0x250] sm:$0xff]
        %v311 = vld [vmem:[%s183 + $0x258] sm:$0xff]
        %v312 = vld [vmem:[%s183 + $0x260] sm:$0xff]
        %v313 = vld [vmem:[%s183 + $0x268] sm:$0xff]
        %v314 = vld [vmem:[%s183 + $0x270] sm:$0xff]
        %v315 = vld [vmem:[%s183 + $0x278] sm:$0xff]
        %v316 = vld [vmem:[%s183 + $0x280] sm:$0xff]
        %v317 = vld [vmem:[%s183 + $0x288] sm:$0xff]
        %v318 = vld [vmem:[%s183 + $0x290] sm:$0xff]
        %v319 = vld [vmem:[%s183 + $0x298] sm:$0xff]
        %v320 = vld [vmem:[%s183 + $0x2a0] sm:$0xff]
        %v321 = vld [vmem:[%s183 + $0x2a8] sm:$0xff]
        %v322 = vld [vmem:[%s183 + $0x2b0] sm:$0xff]
        %v323 = vld [vmem:[%s183 + $0x2b8] sm:$0xff]
        %v324 = vld [vmem:[%s183 + $0x2c0] sm:$0xff]
        %v325 = vld [vmem:[%s183 + $0x2c8] sm:$0xff]
        %v326 = vld [vmem:[%s183 + $0x2d0] sm:$0xff]
        %v327 = vld [vmem:[%s183 + $0x2d8] sm:$0xff]
        %v328 = vld [vmem:[%s183 + $0x2e0] sm:$0xff]
        %v329 = vld [vmem:[%s183 + $0x2e8] sm:$0xff]
        %v330 = vld [vmem:[%s183 + $0x2f0] sm:$0xff]
        %v331 = vld [vmem:[%s183 + $0x2f8] sm:$0xff]
        %v332 = vld [vmem:[%s183 + $0x300] sm:$0xff]
        %v333 = vld [vmem:[%s183 + $0x308] sm:$0xff]
        %v334 = vld [vmem:[%s183 + $0x310] sm:$0xff]
        %v335 = vld [vmem:[%s183 + $0x318] sm:$0xff]
        %v336 = vld [vmem:[%s183 + $0x320] sm:$0xff]
        %v337 = vld [vmem:[%s183 + $0x328] sm:$0xff]
        %v338 = vld [vmem:[%s183 + $0x330] sm:$0xff]
        %v339 = vld [vmem:[%s183 + $0x338] sm:$0xff]
        %v340 = vld [vmem:[%s183 + $0x340] sm:$0xff]
        %v341 = vld [vmem:[%s183 + $0x348] sm:$0xff]
        %v342 = vld [vmem:[%s183 + $0x350] sm:$0xff]
        %v343 = vld [vmem:[%s183 + $0x358] sm:$0xff]
        %v344 = vld [vmem:[%s183 + $0x360] sm:$0xff]
        %v345 = vld [vmem:[%s183 + $0x368] sm:$0xff]
        %v346 = vld [vmem:[%s183 + $0x370] sm:$0xff]
        %v347 = vld [vmem:[%s183 + $0x378] sm:$0xff]
        %v348 = vld [vmem:[%s183 + $0x380] sm:$0xff]
        %v349 = vld [vmem:[%s183 + $0x388] sm:$0xff]
        %v350 = vld [vmem:[%s183 + $0x390] sm:$0xff]
        %v351 = vld [vmem:[%s183 + $0x398] sm:$0xff]
        %v352 = vld [vmem:[%s183 + $0x3a0] sm:$0xff]
        %v353 = vld [vmem:[%s183 + $0x3a8] sm:$0xff]
        %v354 = vld [vmem:[%s183 + $0x3b0] sm:$0xff]
        %v355 = vld [vmem:[%s183 + $0x3b8] sm:$0xff]
        %v356 = vld [vmem:[%s183 + $0x3c0] sm:$0xff]
        %v357 = vld [vmem:[%s183 + $0x3c8] sm:$0xff]
        %v358 = vld [vmem:[%s183 + $0x3d0] sm:$0xff]
        %v359 = vld [vmem:[%s183 + $0x3d8] sm:$0xff]
        %v360 = vld [vmem:[%s183 + $0x3e0] sm:$0xff]
        %v361 = vld [vmem:[%s183 + $0x3e8] sm:$0xff]
        %v362 = vld [vmem:[%s183 + $0x3f0] sm:$0xff]
        %v363 = vld [vmem:[%s183 + $0x3f8] sm:$0xff]
        %v364 = vld [vmem:[%s183 + $0x400] sm:$0xff]
        %v365 = vld [vmem:[%s183 + $0x408] sm:$0xff]
        %v366 = vld [vmem:[%s183 + $0x410] sm:$0xff]
        %v367 = vld [vmem:[%s183 + $0x418] sm:$0xff]
        %v368 = vld [vmem:[%s183 + $0x420] sm:$0xff]
        %v369 = vld [vmem:[%s183 + $0x428] sm:$0xff]
        %v370 = vld [vmem:[%s183 + $0x430] sm:$0xff]
        %v371 = vld [vmem:[%s183 + $0x438] sm:$0xff]
        %v372 = vld [vmem:[%s183 + $0x440] sm:$0xff]
        %v373 = vld [vmem:[%s183 + $0x448] sm:$0xff]
        %v374 = vld [vmem:[%s183 + $0x450] sm:$0xff]
        %v375 = vld [vmem:[%s183 + $0x458] sm:$0xff]
        %v376 = vld [vmem:[%s183 + $0x460] sm:$0xff]
        %v377 = vld [vmem:[%s183 + $0x468] sm:$0xff]
        %v378 = vld [vmem:[%s183 + $0x470] sm:$0xff]
        %v379 = vld [vmem:[%s183 + $0x478] sm:$0xff]
        %v380 = vld [vmem:[%s183 + $0x480] sm:$0xff]
        %v381 = vld [vmem:[%s183 + $0x488] sm:$0xff]
        %v382 = vld [vmem:[%s183 + $0x490] sm:$0xff]
        %v383 = vld [vmem:[%s183 + $0x498] sm:$0xff]
        %v384 = vld [vmem:[%s183 + $0x4a0] sm:$0xff]
        %v385 = vld [vmem:[%s183 + $0x4a8] sm:$0xff]
        %v386 = vld [vmem:[%s183 + $0x4b0] sm:$0xff]
        %v387 = vld [vmem:[%s183 + $0x4b8] sm:$0xff]
        %v388 = vld [vmem:[%s183 + $0x4c0] sm:$0xff]
        %v389 = vld [vmem:[%s183 + $0x4c8] sm:$0xff]
        %v390 = vld [vmem:[%s183 + $0x4d0] sm:$0xff]
        %v391 = vld [vmem:[%s183 + $0x4d8] sm:$0xff]
        %v392 = vld [vmem:[%s183 + $0x4e0] sm:$0xff]
        %v393 = vld [vmem:[%s183 + $0x4e8] sm:$0xff]
        %v394 = vld [vmem:[%s183 + $0x4f0] sm:$0xff]
        %v395 = vld [vmem:[%s183 + $0x4f8] sm:$0xff]
        %v396 = vld [vmem:[%s183 + $0x500] sm:$0xff]
        %v397 = vld [vmem:[%s183 + $0x508] sm:$0xff]
        %v398 = vld [vmem:[%s183 + $0x510] sm:$0xff]
        %v399 = vld [vmem:[%s183 + $0x518] sm:$0xff]
        %v400 = vld [vmem:[%s183 + $0x520] sm:$0xff]
        %v401 = vld [vmem:[%s183 + $0x528] sm:$0xff]
        %v402 = vld [vmem:[%s183 + $0x530] sm:$0xff]
        %v403 = vld [vmem:[%s183 + $0x538] sm:$0xff]
        %v404 = vld [vmem:[%s183 + $0x540] sm:$0xff]
        %v405 = vld [vmem:[%s183 + $0x548] sm:$0xff]
        %v406 = vld [vmem:[%s183 + $0x550] sm:$0xff]
        %v407 = vld [vmem:[%s183 + $0x558] sm:$0xff]
        %v408 = vld [vmem:[%s183 + $0x560] sm:$0xff]
        %v409 = vld [vmem:[%s183 + $0x568] sm:$0xff]
        %v410 = vld [vmem:[%s183 + $0x570] sm:$0xff]
        %v411 = vld [vmem:[%s183 + $0x578] sm:$0xff]
        %v412 = vld [vmem:[%s183 + $0x580] sm:$0xff]
        %v413 = vld [vmem:[%s183 + $0x588] sm:$0xff]
        %v414 = vld [vmem:[%s183 + $0x590] sm:$0xff]
        %v415 = vld [vmem:[%s183 + $0x598] sm:$0xff]
        %v416 = vld [vmem:[%s183 + $0x5a0] sm:$0xff]
        %v417 = vld [vmem:[%s183 + $0x5a8] sm:$0xff]
        %v418 = vld [vmem:[%s183 + $0x5b0] sm:$0xff]
        %v419 = vld [vmem:[%s183 + $0x5b8] sm:$0xff]
        %v420 = vld [vmem:[%s183 + $0x5c0] sm:$0xff]
        %v421 = vld [vmem:[%s183 + $0x5c8] sm:$0xff]
        %v422 = vld [vmem:[%s183 + $0x5d0] sm:$0xff]
        %v423 = vld [vmem:[%s183 + $0x5d8] sm:$0xff]
        %v424 = vld [vmem:[%s183 + $0x5e0] sm:$0xff]
        %v425 = vld [vmem:[%s183 + $0x5e8] sm:$0xff]
        %v426 = vld [vmem:[%s183 + $0x5f0] sm:$0xff]
        %v427 = vld [vmem:[%s183 + $0x5f8] sm:$0xff]
        %v428 = vld [vmem:[%s183 + $0x600] sm:$0xff]
        %v429 = vld [vmem:[%s183 + $0x608] sm:$0xff]
        %v430 = vld [vmem:[%s183 + $0x610] sm:$0xff]
        %v431 = vld [vmem:[%s183 + $0x618] sm:$0xff]
        %v432 = vld [vmem:[%s183 + $0x620] sm:$0xff]
        %v433 = vld [vmem:[%s183 + $0x628] sm:$0xff]
        %v434 = vld [vmem:[%s183 + $0x630] sm:$0xff]
        %v435 = vld [vmem:[%s183 + $0x638] sm:$0xff]
        %v436 = vld [vmem:[%s183 + $0x640] sm:$0xff]
        %v437 = vld [vmem:[%s183 + $0x648] sm:$0xff]
        %v438 = vld [vmem:[%s183 + $0x650] sm:$0xff]
        %v439 = vld [vmem:[%s183 + $0x658] sm:$0xff]
        %v440 = vld [vmem:[%s183 + $0x660] sm:$0xff]
        %v441 = vld [vmem:[%s183 + $0x668] sm:$0xff]
        %v442 = vld [vmem:[%s183 + $0x670] sm:$0xff]
        %v443 = vld [vmem:[%s183 + $0x678] sm:$0xff]
        %v444 = vld [vmem:[%s183 + $0x680] sm:$0xff]
        %v445 = vld [vmem:[%s183 + $0x688] sm:$0xff]
        %v446 = vld [vmem:[%s183 + $0x690] sm:$0xff]
        %v447 = vld [vmem:[%s183 + $0x698] sm:$0xff]
        %v448 = vld [vmem:[%s183 + $0x6a0] sm:$0xff]
        %v449 = vld [vmem:[%s183 + $0x6a8] sm:$0xff]
        %v450 = vld [vmem:[%s183 + $0x6b0] sm:$0xff]
        %v451 = vld [vmem:[%s183 + $0x6b8] sm:$0xff]
        %v452 = vld [vmem:[%s183 + $0x6c0] sm:$0xff]
        %v453 = vld [vmem:[%s183 + $0x6c8] sm:$0xff]
        %v454 = vld [vmem:[%s183 + $0x6d0] sm:$0xff]
        %v455 = vld [vmem:[%s183 + $0x6d8] sm:$0xff]
        %v456 = vld [vmem:[%s183 + $0x6e0] sm:$0xff]
        %v457 = vld [vmem:[%s183 + $0x6e8] sm:$0xff]
        %v458 = vld [vmem:[%s183 + $0x6f0] sm:$0xff]
        %v459 = vld [vmem:[%s183 + $0x6f8] sm:$0xff]
        %v460 = vld [vmem:[%s183 + $0x700] sm:$0xff]
        %v461 = vld [vmem:[%s183 + $0x708] sm:$0xff]
        %v462 = vld [vmem:[%s183 + $0x710] sm:$0xff]
        %v463 = vld [vmem:[%s183 + $0x718] sm:$0xff]
        %v464 = vld [vmem:[%s183 + $0x720] sm:$0xff]
        %v465 = vld [vmem:[%s183 + $0x728] sm:$0xff]
        %v466 = vld [vmem:[%s183 + $0x730] sm:$0xff]
        %v467 = vld [vmem:[%s183 + $0x738] sm:$0xff]
        %v468 = vld [vmem:[%s183 + $0x740] sm:$0xff]
        %v469 = vld [vmem:[%s183 + $0x748] sm:$0xff]
        %v470 = vld [vmem:[%s183 + $0x750] sm:$0xff]
        %v471 = vld [vmem:[%s183 + $0x758] sm:$0xff]
        %v472 = vld [vmem:[%s183 + $0x760] sm:$0xff]
        %v473 = vld [vmem:[%s183 + $0x768] sm:$0xff]
        %v474 = vld [vmem:[%s183 + $0x770] sm:$0xff]
        %v475 = vld [vmem:[%s183 + $0x778] sm:$0xff]
        %v476 = vld [vmem:[%s183 + $0x780] sm:$0xff]
        %v477 = vld [vmem:[%s183 + $0x788] sm:$0xff]
        %v478 = vld [vmem:[%s183 + $0x790] sm:$0xff]
        %v479 = vld [vmem:[%s183 + $0x798] sm:$0xff]
        %v480 = vld [vmem:[%s183 + $0x7a0] sm:$0xff]
        %v481 = vld [vmem:[%s183 + $0x7a8] sm:$0xff]
        %v482 = vld [vmem:[%s183 + $0x7b0] sm:$0xff]
        %v483 = vld [vmem:[%s183 + $0x7b8] sm:$0xff]
        %v484 = vld [vmem:[%s183 + $0x7c0] sm:$0xff]
        %v485 = vld [vmem:[%s183 + $0x7c8] sm:$0xff]
        %v486 = vld [vmem:[%s183 + $0x7d0] sm:$0xff]
        %v487 = vld [vmem:[%s183 + $0x7d8] sm:$0xff]
        %v488 = vld [vmem:[%s183 + $0x7e0] sm:$0xff]
        %v489 = vld [vmem:[%s183 + $0x7e8] sm:$0xff]
        %v490 = vld [vmem:[%s183 + $0x7f0] sm:$0xff]
        %v491 = vld [vmem:[%s183 + $0x7f8] sm:$0xff]
        %v492 = vld [vmem:[%s183 + $0x800] sm:$0xff]
        %v493 = vld [vmem:[%s183 + $0x808] sm:$0xff]
        %v494 = vld [vmem:[%s183 + $0x810] sm:$0xff]
        %v495 = vld [vmem:[%s183 + $0x818] sm:$0xff]
        %v496 = vld [vmem:[%s183 + $0x820] sm:$0xff]
        %v497 = vld [vmem:[%s183 + $0x828] sm:$0xff]
        %v498 = vld [vmem:[%s183 + $0x830] sm:$0xff]
        %v499 = vld [vmem:[%s183 + $0x838] sm:$0xff]
        %v500 = vld [vmem:[%s183 + $0x840] sm:$0xff]
        %v501 = vld [vmem:[%s183 + $0x848] sm:$0xff]
        %v502 = vld [vmem:[%s183 + $0x850] sm:$0xff]
        %v503 = vld [vmem:[%s183 + $0x858] sm:$0xff]
        %v504 = vld [vmem:[%s183 + $0x860] sm:$0xff]
        %v505 = vld [vmem:[%s183 + $0x868] sm:$0xff]
        %v506 = vld [vmem:[%s183 + $0x870] sm:$0xff]
        %v507 = vld [vmem:[%s183 + $0x878] sm:$0xff]
        %v508 = vld [vmem:[%s183 + $0x880] sm:$0xff]
        %v509 = vld [vmem:[%s183 + $0x888] sm:$0xff]
        %v510 = vld [vmem:[%s183 + $0x890] sm:$0xff]
        %v511 = vld [vmem:[%s183 + $0x898] sm:$0xff]
        %v512 = vld [vmem:[%s183 + $0x8a0] sm:$0xff]
        %v513 = vld [vmem:[%s183 + $0x8a8] sm:$0xff]
        %v514 = vld [vmem:[%s183 + $0x8b0] sm:$0xff]
        %v515 = vld [vmem:[%s183 + $0x8b8] sm:$0xff]
        %v516 = vld [vmem:[%s183 + $0x8c0] sm:$0xff]
        %v517 = vld [vmem:[%s183 + $0x8c8] sm:$0xff]
        %v518 = vld [vmem:[%s183 + $0x8d0] sm:$0xff]
        %v519 = vld [vmem:[%s183 + $0x8d8] sm:$0xff]
        %v520 = vld [vmem:[%s183 + $0x8e0] sm:$0xff]
        %v521 = vld [vmem:[%s183 + $0x8e8] sm:$0xff]
        %v522 = vld [vmem:[%s183 + $0x8f0] sm:$0xff]
        %v523 = vld [vmem:[%s183 + $0x8f8] sm:$0xff]
        %v524 = vld [vmem:[%s183 + $0x900] sm:$0xff]
        %v525 = vld [vmem:[%s183 + $0x908] sm:$0xff]
        %v526 = vld [vmem:[%s183 + $0x910] sm:$0xff]
        %v527 = vld [vmem:[%s183 + $0x918] sm:$0xff]
        %v528 = vld [vmem:[%s183 + $0x920] sm:$0xff]
        %v529 = vld [vmem:[%s183 + $0x928] sm:$0xff]
        %v530 = vld [vmem:[%s183 + $0x930] sm:$0xff]
        %v531 = vld [vmem:[%s183 + $0x938] sm:$0xff]
        %v532 = vld [vmem:[%s183 + $0x940] sm:$0xff]
        %v533 = vld [vmem:[%s183 + $0x948] sm:$0xff]
        %v534 = vld [vmem:[%s183 + $0x950] sm:$0xff]
        %v535 = vld [vmem:[%s183 + $0x958] sm:$0xff]
        %v536 = vld [vmem:[%s183 + $0x960] sm:$0xff]
        %v537 = vld [vmem:[%s183 + $0x968] sm:$0xff]
        %v538 = vld [vmem:[%s183 + $0x970] sm:$0xff]
        %v539 = vld [vmem:[%s183 + $0x978] sm:$0xff]
        %v540 = vld [vmem:[%s183 + $0x980] sm:$0xff]
        %v541 = vld [vmem:[%s183 + $0x988] sm:$0xff]
        %v542 = vld [vmem:[%s183 + $0x990] sm:$0xff]
        %v543 = vld [vmem:[%s183 + $0x998] sm:$0xff]
        %v544 = vld [vmem:[%s183 + $0x9a0] sm:$0xff]
        %v545 = vld [vmem:[%s183 + $0x9a8] sm:$0xff]
        %v546 = vld [vmem:[%s183 + $0x9b0] sm:$0xff]
        %v547 = vld [vmem:[%s183 + $0x9b8] sm:$0xff]
        %v548 = vld [vmem:[%s183 + $0x9c0] sm:$0xff]
        %v549 = vld [vmem:[%s183 + $0x9c8] sm:$0xff]
        %v550 = vld [vmem:[%s183 + $0x9d0] sm:$0xff]
        %v551 = vld [vmem:[%s183 + $0x9d8] sm:$0xff]
        %v552 = vld [vmem:[%s183 + $0x9e0] sm:$0xff]
        %v553 = vld [vmem:[%s183 + $0x9e8] sm:$0xff]
        %v554 = vld [vmem:[%s183 + $0x9f0] sm:$0xff]
        %v555 = vld [vmem:[%s183 + $0x9f8] sm:$0xff]
        %v556 = vld [vmem:[%s183 + $0xa00] sm:$0xff]
        %v557 = vld [vmem:[%s183 + $0xa08] sm:$0xff]
        %v558 = vld [vmem:[%s183 + $0xa10] sm:$0xff]
        %v559 = vld [vmem:[%s183 + $0xa18] sm:$0xff]
        %v560 = vld [vmem:[%s183 + $0xa20] sm:$0xff]
        %v561 = vld [vmem:[%s183 + $0xa28] sm:$0xff]
        %v562 = vld [vmem:[%s183 + $0xa30] sm:$0xff]
        %v563 = vld [vmem:[%s183 + $0xa38] sm:$0xff]
        %v564 = vld [vmem:[%s183 + $0xa40] sm:$0xff]
        %v565 = vld [vmem:[%s183 + $0xa48] sm:$0xff]
        %v566 = vld [vmem:[%s183 + $0xa50] sm:$0xff]
        %v567 = vld [vmem:[%s183 + $0xa58] sm:$0xff]
        %v568 = vld [vmem:[%s183 + $0xa60] sm:$0xff]
        %v569 = vld [vmem:[%s183 + $0xa68] sm:$0xff]
        %v570 = vld [vmem:[%s183 + $0xa70] sm:$0xff]
        %v571 = vld [vmem:[%s183 + $0xa78] sm:$0xff]
        %v572 = vld [vmem:[%s183 + $0xa80] sm:$0xff]
        %v573 = vld [vmem:[%s183 + $0xa88] sm:$0xff]
        %v574 = vld [vmem:[%s183 + $0xa90] sm:$0xff]
        %v575 = vld [vmem:[%s183 + $0xa98] sm:$0xff]
        %v576 = vld [vmem:[%s183 + $0xaa0] sm:$0xff]
        %v577 = vld [vmem:[%s183 + $0xaa8] sm:$0xff]
        %v578 = vld [vmem:[%s183 + $0xab0] sm:$0xff]
        %v579 = vld [vmem:[%s183 + $0xab8] sm:$0xff]
        %v580 = vld [vmem:[%s183 + $0xac0] sm:$0xff]
        %v581 = vld [vmem:[%s183 + $0xac8] sm:$0xff]
        %v582 = vld [vmem:[%s183 + $0xad0] sm:$0xff]
        %v583 = vld [vmem:[%s183 + $0xad8] sm:$0xff]
        %v584 = vld [vmem:[%s183 + $0xae0] sm:$0xff]
        %v585 = vld [vmem:[%s183 + $0xae8] sm:$0xff]
        %v586 = vld [vmem:[%s183 + $0xaf0] sm:$0xff]
        %v587 = vld [vmem:[%s183 + $0xaf8] sm:$0xff]
        %v588 = vld [vmem:[%s183 + $0xb00] sm:$0xff]
        %v589 = vld [vmem:[%s183 + $0xb08] sm:$0xff]
        %v590 = vld [vmem:[%s183 + $0xb10] sm:$0xff]
        %v591 = vld [vmem:[%s183 + $0xb18] sm:$0xff]
        %v592 = vld [vmem:[%s183 + $0xb20] sm:$0xff]
        %v593 = vld [vmem:[%s183 + $0xb28] sm:$0xff]
        %v594 = vld [vmem:[%s183 + $0xb30] sm:$0xff]
        %v595 = vld [vmem:[%s183 + $0xb38] sm:$0xff]
        %v596 = vld [vmem:[%s183 + $0xb40] sm:$0xff]
        %v597 = vld [vmem:[%s183 + $0xb48] sm:$0xff]
        %v598 = vld [vmem:[%s183 + $0xb50] sm:$0xff]
        %v599 = vld [vmem:[%s183 + $0xb58] sm:$0xff]
        %v600 = vld [vmem:[%s183 + $0xb60] sm:$0xff]
        %v601 = vld [vmem:[%s183 + $0xb68] sm:$0xff]
        %v602 = vld [vmem:[%s183 + $0xb70] sm:$0xff]
        %v603 = vld [vmem:[%s183 + $0xb78] sm:$0xff]
        %v604 = vld [vmem:[%s183 + $0xb80] sm:$0xff]
        %v605 = vld [vmem:[%s183 + $0xb88] sm:$0xff]
        %v606 = vld [vmem:[%s183 + $0xb90] sm:$0xff]
        %v607 = vld [vmem:[%s183 + $0xb98] sm:$0xff]
        %v608 = vld [vmem:[%s183 + $0xba0] sm:$0xff]
        %v609 = vld [vmem:[%s183 + $0xba8] sm:$0xff]
        %v610 = vld [vmem:[%s183 + $0xbb0] sm:$0xff]
        %v611 = vld [vmem:[%s183 + $0xbb8] sm:$0xff]
        %v612 = vld [vmem:[%s183 + $0xbc0] sm:$0xff]
        %v613 = vld [vmem:[%s183 + $0xbc8] sm:$0xff]
        %v614 = vld [vmem:[%s183 + $0xbd0] sm:$0xff]
        %v615 = vld [vmem:[%s183 + $0xbd8] sm:$0xff]
        %v616 = vld [vmem:[%s183 + $0xbe0] sm:$0xff]
        %v617 = vld [vmem:[%s183 + $0xbe8] sm:$0xff]
        %v618 = vld [vmem:[%s183 + $0xbf0] sm:$0xff]
        %v619 = vld [vmem:[%s183 + $0xbf8] sm:$0xff]
        %v620 = vld [vmem:[%s183 + $0xc00] sm:$0xff]
        %v621 = vld [vmem:[%s183 + $0xc08] sm:$0xff]
        %v622 = vld [vmem:[%s183 + $0xc10] sm:$0xff]
        %v623 = vld [vmem:[%s183 + $0xc18] sm:$0xff]
        %v624 = vld [vmem:[%s183 + $0xc20] sm:$0xff]
        %v625 = vld [vmem:[%s183 + $0xc28] sm:$0xff]
        %v626 = vld [vmem:[%s183 + $0xc30] sm:$0xff]
        %v627 = vld [vmem:[%s183 + $0xc38] sm:$0xff]
        %v628 = vld [vmem:[%s183 + $0xc40] sm:$0xff]
        %v629 = vld [vmem:[%s183 + $0xc48] sm:$0xff]
        %v630 = vld [vmem:[%s183 + $0xc50] sm:$0xff]
        %v631 = vld [vmem:[%s183 + $0xc58] sm:$0xff]
        %v632 = vld [vmem:[%s183 + $0xc60] sm:$0xff]
        %v633 = vld [vmem:[%s183 + $0xc68] sm:$0xff]
        %v634 = vld [vmem:[%s183 + $0xc70] sm:$0xff]
        %v635 = vld [vmem:[%s183 + $0xc78] sm:$0xff]
        %v636 = vld [vmem:[%s183 + $0xc80] sm:$0xff]
        %v637 = vld [vmem:[%s183 + $0xc88] sm:$0xff]
        %v638 = vld [vmem:[%s183 + $0xc90] sm:$0xff]
        %v639 = vld [vmem:[%s183 + $0xc98] sm:$0xff]
        %v640 = vld [vmem:[%s183 + $0xca0] sm:$0xff]
        %v641 = vld [vmem:[%s183 + $0xca8] sm:$0xff]
        %v642 = vld [vmem:[%s183 + $0xcb0] sm:$0xff]
        %v643 = vld [vmem:[%s183 + $0xcb8] sm:$0xff]
        %v644 = vld [vmem:[%s183 + $0xcc0] sm:$0xff]
        %v645 = vld [vmem:[%s183 + $0xcc8] sm:$0xff]
        %v646 = vld [vmem:[%s183 + $0xcd0] sm:$0xff]
        %v647 = vld [vmem:[%s183 + $0xcd8] sm:$0xff]
        %v648 = vld [vmem:[%s183 + $0xce0] sm:$0xff]
        %v649 = vld [vmem:[%s183 + $0xce8] sm:$0xff]
        %v650 = vld [vmem:[%s183 + $0xcf0] sm:$0xff]
        %v651 = vld [vmem:[%s183 + $0xcf8] sm:$0xff]
        %v652 = vld [vmem:[%s192] sm:$0xff]
        %v653 = vld [vmem:[%s192 + $0x8] sm:$0xff]
        %v654 = vld [vmem:[%s192 + $0x10] sm:$0xff]
        %v655 = vld [vmem:[%s192 + $0x18] sm:$0xff]
        %v656 = vld [vmem:[%s192 + $0x20] sm:$0xff]
        %v657 = vld [vmem:[%s192 + $0x28] sm:$0xff]
        %v658 = vld [vmem:[%s192 + $0x30] sm:$0xff]
        %v659 = vld [vmem:[%s192 + $0x38] sm:$0xff]
        %v660 = vld [vmem:[%s192 + $0x40] sm:$0xff]
        %v661 = vld [vmem:[%s192 + $0x48] sm:$0xff]
        %v662 = vld [vmem:[%s192 + $0x50] sm:$0xff]
        %v663 = vld [vmem:[%s192 + $0x58] sm:$0xff]
        %v664 = vld [vmem:[%s192 + $0x60] sm:$0xff]
        %v665 = vld [vmem:[%s192 + $0x68] sm:$0xff]
        %v666 = vld [vmem:[%s192 + $0x70] sm:$0xff]
        %v667 = vld [vmem:[%s192 + $0x78] sm:$0xff]
        %v668 = vld [vmem:[%s192 + $0x80] sm:$0xff]
        %v669 = vld [vmem:[%s192 + $0x88] sm:$0xff]
        %v670 = vld [vmem:[%s192 + $0x90] sm:$0xff]
        %v671 = vld [vmem:[%s192 + $0x98] sm:$0xff]
        %v672 = vld [vmem:[%s192 + $0xa0] sm:$0xff]
        %v673 = vld [vmem:[%s192 + $0xa8] sm:$0xff]
        %v674 = vld [vmem:[%s192 + $0xb0] sm:$0xff]
        %v675 = vld [vmem:[%s192 + $0xb8] sm:$0xff]
        %v676 = vld [vmem:[%s192 + $0xc0] sm:$0xff]
        %v677 = vld [vmem:[%s192 + $0xc8] sm:$0xff]
        %v678 = vld [vmem:[%s192 + $0xd0] sm:$0xff]
        %v679 = vld [vmem:[%s192 + $0xd8] sm:$0xff]
        %v680 = vld [vmem:[%s192 + $0xe0] sm:$0xff]
        %v681 = vld [vmem:[%s192 + $0xe8] sm:$0xff]
        %v682 = vld [vmem:[%s192 + $0xf0] sm:$0xff]
        %v683 = vld [vmem:[%s192 + $0xf8] sm:$0xff]
        %v684 = vld [vmem:[%s192 + $0x100] sm:$0xff]
        %v685 = vld [vmem:[%s192 + $0x108] sm:$0xff]
        %v686 = vld [vmem:[%s192 + $0x110] sm:$0xff]
        %v687 = vld [vmem:[%s192 + $0x118] sm:$0xff]
        %v688 = vld [vmem:[%s192 + $0x120] sm:$0xff]
        %v689 = vld [vmem:[%s192 + $0x128] sm:$0xff]
        %v690 = vld [vmem:[%s192 + $0x130] sm:$0xff]
        %v691 = vld [vmem:[%s192 + $0x138] sm:$0xff]
        %v692 = vld [vmem:[%s192 + $0x140] sm:$0xff]
        %v693 = vld [vmem:[%s192 + $0x148] sm:$0xff]
        %v694 = vld [vmem:[%s192 + $0x150] sm:$0xff]
        %v695 = vld [vmem:[%s192 + $0x158] sm:$0xff]
        %v696 = vld [vmem:[%s192 + $0x160] sm:$0xff]
        %v697 = vld [vmem:[%s192 + $0x168] sm:$0xff]
        %v698 = vld [vmem:[%s192 + $0x170] sm:$0xff]
        %v699 = vld [vmem:[%s192 + $0x178] sm:$0xff]
        %v700 = vld [vmem:[%s192 + $0x180] sm:$0xff]
        %v701 = vld [vmem:[%s192 + $0x188] sm:$0xff]
        %v702 = vld [vmem:[%s192 + $0x190] sm:$0xff]
        %v703 = vld [vmem:[%s192 + $0x198] sm:$0xff]
        %v704 = vld [vmem:[%s192 + $0x1a0] sm:$0xff]
        %v705 = vld [vmem:[%s192 + $0x1a8] sm:$0xff]
        %v706 = vld [vmem:[%s192 + $0x1b0] sm:$0xff]
        %v707 = vld [vmem:[%s192 + $0x1b8] sm:$0xff]
        %v708 = vld [vmem:[%s192 + $0x1c0] sm:$0xff]
        %v709 = vld [vmem:[%s192 + $0x1c8] sm:$0xff]
        %v710 = vld [vmem:[%s192 + $0x1d0] sm:$0xff]
        %v711 = vld [vmem:[%s192 + $0x1d8] sm:$0xff]
        %v712 = vld [vmem:[%s192 + $0x1e0] sm:$0xff]
        %v713 = vld [vmem:[%s192 + $0x1e8] sm:$0xff]
        %v714 = vld [vmem:[%s192 + $0x1f0] sm:$0xff]
        %v715 = vld [vmem:[%s192 + $0x1f8] sm:$0xff]
        %v716 = vld [vmem:[%s192 + $0x200] sm:$0xff]
        %v717 = vld [vmem:[%s192 + $0x208] sm:$0xff]
        %v718 = vld [vmem:[%s192 + $0x210] sm:$0xff]
        %v719 = vld [vmem:[%s192 + $0x218] sm:$0xff]
        %v720 = vld [vmem:[%s192 + $0x220] sm:$0xff]
        %v721 = vld [vmem:[%s192 + $0x228] sm:$0xff]
        %v722 = vld [vmem:[%s192 + $0x230] sm:$0xff]
        %v723 = vld [vmem:[%s192 + $0x238] sm:$0xff]
        %v724 = vld [vmem:[%s192 + $0x240] sm:$0xff]
        %v725 = vld [vmem:[%s192 + $0x248] sm:$0xff]
        %v726 = vld [vmem:[%s192 + $0x250] sm:$0xff]
        %v727 = vld [vmem:[%s192 + $0x258] sm:$0xff]
        %v728 = vld [vmem:[%s192 + $0x260] sm:$0xff]
        %v729 = vld [vmem:[%s192 + $0x268] sm:$0xff]
        %v730 = vld [vmem:[%s192 + $0x270] sm:$0xff]
        %v731 = vld [vmem:[%s192 + $0x278] sm:$0xff]
        %v732 = vld [vmem:[%s192 + $0x280] sm:$0xff]
        %v733 = vld [vmem:[%s192 + $0x288] sm:$0xff]
        %v734 = vld [vmem:[%s192 + $0x290] sm:$0xff]
        %v735 = vld [vmem:[%s192 + $0x298] sm:$0xff]
        %v736 = vld [vmem:[%s192 + $0x2a0] sm:$0xff]
        %v737 = vld [vmem:[%s192 + $0x2a8] sm:$0xff]
        %v738 = vld [vmem:[%s192 + $0x2b0] sm:$0xff]
        %v739 = vld [vmem:[%s192 + $0x2b8] sm:$0xff]
        %v740 = vld [vmem:[%s192 + $0x2c0] sm:$0xff]
        %v741 = vld [vmem:[%s192 + $0x2c8] sm:$0xff]
        %v742 = vld [vmem:[%s192 + $0x2d0] sm:$0xff]
        %v743 = vld [vmem:[%s192 + $0x2d8] sm:$0xff]
        %v744 = vld [vmem:[%s192 + $0x2e0] sm:$0xff]
        %v745 = vld [vmem:[%s192 + $0x2e8] sm:$0xff]
        %v746 = vld [vmem:[%s192 + $0x2f0] sm:$0xff]
        %v747 = vld [vmem:[%s192 + $0x2f8] sm:$0xff]
        %v748 = vld [vmem:[%s192 + $0x300] sm:$0xff]
        %v749 = vld [vmem:[%s192 + $0x308] sm:$0xff]
        %v750 = vld [vmem:[%s192 + $0x310] sm:$0xff]
        %v751 = vld [vmem:[%s192 + $0x318] sm:$0xff]
        %v752 = vld [vmem:[%s192 + $0x320] sm:$0xff]
        %v753 = vld [vmem:[%s192 + $0x328] sm:$0xff]
        %v754 = vld [vmem:[%s192 + $0x330] sm:$0xff]
        %v755 = vld [vmem:[%s192 + $0x338] sm:$0xff]
        %v756 = vld [vmem:[%s192 + $0x340] sm:$0xff]
        %v757 = vld [vmem:[%s192 + $0x348] sm:$0xff]
        %v758 = vld [vmem:[%s192 + $0x350] sm:$0xff]
        %v759 = vld [vmem:[%s192 + $0x358] sm:$0xff]
        %v760 = vld [vmem:[%s192 + $0x360] sm:$0xff]
        %v761 = vld [vmem:[%s192 + $0x368] sm:$0xff]
        %v762 = vld [vmem:[%s192 + $0x370] sm:$0xff]
        %v763 = vld [vmem:[%s192 + $0x378] sm:$0xff]
        %v764 = vld [vmem:[%s192 + $0x380] sm:$0xff]
        %v765 = vld [vmem:[%s192 + $0x388] sm:$0xff]
        %v766 = vld [vmem:[%s192 + $0x390] sm:$0xff]
        %v767 = vld [vmem:[%s192 + $0x398] sm:$0xff]
        %v768 = vld [vmem:[%s192 + $0x3a0] sm:$0xff]
        %v769 = vld [vmem:[%s192 + $0x3a8] sm:$0xff]
        %v770 = vld [vmem:[%s192 + $0x3b0] sm:$0xff]
        %v771 = vld [vmem:[%s192 + $0x3b8] sm:$0xff]
        %v772 = vld [vmem:[%s192 + $0x3c0] sm:$0xff]
        %v773 = vld [vmem:[%s192 + $0x3c8] sm:$0xff]
        %v774 = vld [vmem:[%s192 + $0x3d0] sm:$0xff]
        %v775 = vld [vmem:[%s192 + $0x3d8] sm:$0xff]
        %v776 = vld [vmem:[%s192 + $0x3e0] sm:$0xff]
        %v777 = vld [vmem:[%s192 + $0x3e8] sm:$0xff]
        %v778 = vld [vmem:[%s192 + $0x3f0] sm:$0xff]
        %v779 = vld [vmem:[%s192 + $0x3f8] sm:$0xff]
        %v780 = vld [vmem:[%s192 + $0x400] sm:$0xff]
        %v781 = vld [vmem:[%s192 + $0x408] sm:$0xff]
        %v782 = vld [vmem:[%s192 + $0x410] sm:$0xff]
        %v783 = vld [vmem:[%s192 + $0x418] sm:$0xff]
        %v784 = vld [vmem:[%s192 + $0x420] sm:$0xff]
        %v785 = vld [vmem:[%s192 + $0x428] sm:$0xff]
        %v786 = vld [vmem:[%s192 + $0x430] sm:$0xff]
        %v787 = vld [vmem:[%s192 + $0x438] sm:$0xff]
        %v788 = vld [vmem:[%s192 + $0x440] sm:$0xff]
        %v789 = vld [vmem:[%s192 + $0x448] sm:$0xff]
        %v790 = vld [vmem:[%s192 + $0x450] sm:$0xff]
        %v791 = vld [vmem:[%s192 + $0x458] sm:$0xff]
        %v792 = vld [vmem:[%s192 + $0x460] sm:$0xff]
        %v793 = vld [vmem:[%s192 + $0x468] sm:$0xff]
        %v794 = vld [vmem:[%s192 + $0x470] sm:$0xff]
        %v795 = vld [vmem:[%s192 + $0x478] sm:$0xff]
        %v796 = vld [vmem:[%s192 + $0x480] sm:$0xff]
        %v797 = vld [vmem:[%s192 + $0x488] sm:$0xff]
        %v798 = vld [vmem:[%s192 + $0x490] sm:$0xff]
        %v799 = vld [vmem:[%s192 + $0x498] sm:$0xff]
        %v800 = vld [vmem:[%s192 + $0x4a0] sm:$0xff]
        %v801 = vld [vmem:[%s192 + $0x4a8] sm:$0xff]
        %v802 = vld [vmem:[%s192 + $0x4b0] sm:$0xff]
        %v803 = vld [vmem:[%s192 + $0x4b8] sm:$0xff]
        %v804 = vld [vmem:[%s192 + $0x4c0] sm:$0xff]
        %v805 = vld [vmem:[%s192 + $0x4c8] sm:$0xff]
        %v806 = vld [vmem:[%s192 + $0x4d0] sm:$0xff]
        %v807 = vld [vmem:[%s192 + $0x4d8] sm:$0xff]
        %v808 = vld [vmem:[%s192 + $0x4e0] sm:$0xff]
        %v809 = vld [vmem:[%s192 + $0x4e8] sm:$0xff]
        %v810 = vld [vmem:[%s192 + $0x4f0] sm:$0xff]
        %v811 = vld [vmem:[%s192 + $0x4f8] sm:$0xff]
        %v812 = vld [vmem:[%s192 + $0x500] sm:$0xff]
        %v813 = vld [vmem:[%s192 + $0x508] sm:$0xff]
        %v814 = vld [vmem:[%s192 + $0x510] sm:$0xff]
        %v815 = vld [vmem:[%s192 + $0x518] sm:$0xff]
        %v816 = vld [vmem:[%s192 + $0x520] sm:$0xff]
        %v817 = vld [vmem:[%s192 + $0x528] sm:$0xff]
        %v818 = vld [vmem:[%s192 + $0x530] sm:$0xff]
        %v819 = vld [vmem:[%s192 + $0x538] sm:$0xff]
        %v820 = vld [vmem:[%s192 + $0x540] sm:$0xff]
        %v821 = vld [vmem:[%s192 + $0x548] sm:$0xff]
        %v822 = vld [vmem:[%s192 + $0x550] sm:$0xff]
        %v823 = vld [vmem:[%s192 + $0x558] sm:$0xff]
        %v824 = vld [vmem:[%s192 + $0x560] sm:$0xff]
        %v825 = vld [vmem:[%s192 + $0x568] sm:$0xff]
        %v826 = vld [vmem:[%s192 + $0x570] sm:$0xff]
        %v827 = vld [vmem:[%s192 + $0x578] sm:$0xff]
        %v828 = vld [vmem:[%s192 + $0x580] sm:$0xff]
        %v829 = vld [vmem:[%s192 + $0x588] sm:$0xff]
        %v830 = vld [vmem:[%s192 + $0x590] sm:$0xff]
        %v831 = vld [vmem:[%s192 + $0x598] sm:$0xff]
        %v832 = vld [vmem:[%s192 + $0x5a0] sm:$0xff]
        %v833 = vld [vmem:[%s192 + $0x5a8] sm:$0xff]
        %v834 = vld [vmem:[%s192 + $0x5b0] sm:$0xff]
        %v835 = vld [vmem:[%s192 + $0x5b8] sm:$0xff]
        %v836 = vld [vmem:[%s192 + $0x5c0] sm:$0xff]
        %v837 = vld [vmem:[%s192 + $0x5c8] sm:$0xff]
        %v838 = vld [vmem:[%s192 + $0x5d0] sm:$0xff]
        %v839 = vld [vmem:[%s192 + $0x5d8] sm:$0xff]
        %v840 = vld [vmem:[%s192 + $0x5e0] sm:$0xff]
        %v841 = vld [vmem:[%s192 + $0x5e8] sm:$0xff]
        %v842 = vld [vmem:[%s192 + $0x5f0] sm:$0xff]
        %v843 = vld [vmem:[%s192 + $0x5f8] sm:$0xff]
        %v844 = vld [vmem:[%s192 + $0x600] sm:$0xff]
        %v845 = vld [vmem:[%s192 + $0x608] sm:$0xff]
        %v846 = vld [vmem:[%s192 + $0x610] sm:$0xff]
        %v847 = vld [vmem:[%s192 + $0x618] sm:$0xff]
        %v848 = vld [vmem:[%s192 + $0x620] sm:$0xff]
        %v849 = vld [vmem:[%s192 + $0x628] sm:$0xff]
        %v850 = vld [vmem:[%s192 + $0x630] sm:$0xff]
        %v851 = vld [vmem:[%s192 + $0x638] sm:$0xff]
        %v852 = vld [vmem:[%s192 + $0x640] sm:$0xff]
        %v853 = vld [vmem:[%s192 + $0x648] sm:$0xff]
        %v854 = vld [vmem:[%s192 + $0x650] sm:$0xff]
        %v855 = vld [vmem:[%s192 + $0x658] sm:$0xff]
        %v856 = vld [vmem:[%s192 + $0x660] sm:$0xff]
        %v857 = vld [vmem:[%s192 + $0x668] sm:$0xff]
        %v858 = vld [vmem:[%s192 + $0x670] sm:$0xff]
        %v859 = vld [vmem:[%s192 + $0x678] sm:$0xff]
        %v860 = vld [vmem:[%s192 + $0x680] sm:$0xff]
        %v861 = vld [vmem:[%s192 + $0x688] sm:$0xff]
        %v862 = vld [vmem:[%s192 + $0x690] sm:$0xff]
        %v863 = vld [vmem:[%s192 + $0x698] sm:$0xff]
        %v864 = vld [vmem:[%s192 + $0x6a0] sm:$0xff]
        %v865 = vld [vmem:[%s192 + $0x6a8] sm:$0xff]
        %v866 = vld [vmem:[%s192 + $0x6b0] sm:$0xff]
        %v867 = vld [vmem:[%s192 + $0x6b8] sm:$0xff]
        %v868 = vld [vmem:[%s192 + $0x6c0] sm:$0xff]
        %v869 = vld [vmem:[%s192 + $0x6c8] sm:$0xff]
        %v870 = vld [vmem:[%s192 + $0x6d0] sm:$0xff]
        %v871 = vld [vmem:[%s192 + $0x6d8] sm:$0xff]
        %v872 = vld [vmem:[%s192 + $0x6e0] sm:$0xff]
        %v873 = vld [vmem:[%s192 + $0x6e8] sm:$0xff]
        %v874 = vld [vmem:[%s192 + $0x6f0] sm:$0xff]
        %v875 = vld [vmem:[%s192 + $0x6f8] sm:$0xff]
        %v876 = vld [vmem:[%s192 + $0x700] sm:$0xff]
        %v877 = vld [vmem:[%s192 + $0x708] sm:$0xff]
        %v878 = vld [vmem:[%s192 + $0x710] sm:$0xff]
        %v879 = vld [vmem:[%s192 + $0x718] sm:$0xff]
        %v880 = vld [vmem:[%s192 + $0x720] sm:$0xff]
        %v881 = vld [vmem:[%s192 + $0x728] sm:$0xff]
        %v882 = vld [vmem:[%s192 + $0x730] sm:$0xff]
        %v883 = vld [vmem:[%s192 + $0x738] sm:$0xff]
        %v884 = vld [vmem:[%s192 + $0x740] sm:$0xff]
        %v885 = vld [vmem:[%s192 + $0x748] sm:$0xff]
        %v886 = vld [vmem:[%s192 + $0x750] sm:$0xff]
        %v887 = vld [vmem:[%s192 + $0x758] sm:$0xff]
        %v888 = vld [vmem:[%s192 + $0x760] sm:$0xff]
        %v889 = vld [vmem:[%s192 + $0x768] sm:$0xff]
        %v890 = vld [vmem:[%s192 + $0x770] sm:$0xff]
        %v891 = vld [vmem:[%s192 + $0x778] sm:$0xff]
        %v892 = vld [vmem:[%s192 + $0x780] sm:$0xff]
        %v893 = vld [vmem:[%s192 + $0x788] sm:$0xff]
        %v894 = vld [vmem:[%s192 + $0x790] sm:$0xff]
        %v895 = vld [vmem:[%s192 + $0x798] sm:$0xff]
        %v896 = vld [vmem:[%s192 + $0x7a0] sm:$0xff]
        %v897 = vld [vmem:[%s192 + $0x7a8] sm:$0xff]
        %v898 = vld [vmem:[%s192 + $0x7b0] sm:$0xff]
        %v899 = vld [vmem:[%s192 + $0x7b8] sm:$0xff]
        %v900 = vld [vmem:[%s192 + $0x7c0] sm:$0xff]
        %v901 = vld [vmem:[%s192 + $0x7c8] sm:$0xff]
        %v902 = vld [vmem:[%s192 + $0x7d0] sm:$0xff]
        %v903 = vld [vmem:[%s192 + $0x7d8] sm:$0xff]
        %v904 = vld [vmem:[%s192 + $0x7e0] sm:$0xff]
        %v905 = vld [vmem:[%s192 + $0x7e8] sm:$0xff]
        %v906 = vld [vmem:[%s192 + $0x7f0] sm:$0xff]
        %v907 = vld [vmem:[%s192 + $0x7f8] sm:$0xff]
        %v908 = vld [vmem:[%s192 + $0x800] sm:$0xff]
        %v909 = vld [vmem:[%s192 + $0x808] sm:$0xff]
        %v910 = vld [vmem:[%s192 + $0x810] sm:$0xff]
        %v911 = vld [vmem:[%s192 + $0x818] sm:$0xff]
        %v912 = vld [vmem:[%s192 + $0x820] sm:$0xff]
        %v913 = vld [vmem:[%s192 + $0x828] sm:$0xff]
        %v914 = vld [vmem:[%s192 + $0x830] sm:$0xff]
        %v915 = vld [vmem:[%s192 + $0x838] sm:$0xff]
        %v916 = vld [vmem:[%s192 + $0x840] sm:$0xff]
        %v917 = vld [vmem:[%s192 + $0x848] sm:$0xff]
        %v918 = vld [vmem:[%s192 + $0x850] sm:$0xff]
        %v919 = vld [vmem:[%s192 + $0x858] sm:$0xff]
        %v920 = vld [vmem:[%s192 + $0x860] sm:$0xff]
        %v921 = vld [vmem:[%s192 + $0x868] sm:$0xff]
        %v922 = vld [vmem:[%s192 + $0x870] sm:$0xff]
        %v923 = vld [vmem:[%s192 + $0x878] sm:$0xff]
        %v924 = vld [vmem:[%s192 + $0x880] sm:$0xff]
        %v925 = vld [vmem:[%s192 + $0x888] sm:$0xff]
        %v926 = vld [vmem:[%s192 + $0x890] sm:$0xff]
        %v927 = vld [vmem:[%s192 + $0x898] sm:$0xff]
        %v928 = vld [vmem:[%s192 + $0x8a0] sm:$0xff]
        %v929 = vld [vmem:[%s192 + $0x8a8] sm:$0xff]
        %v930 = vld [vmem:[%s192 + $0x8b0] sm:$0xff]
        %v931 = vld [vmem:[%s192 + $0x8b8] sm:$0xff]
        %v932 = vld [vmem:[%s192 + $0x8c0] sm:$0xff]
        %v933 = vld [vmem:[%s192 + $0x8c8] sm:$0xff]
        %v934 = vld [vmem:[%s192 + $0x8d0] sm:$0xff]
        %v935 = vld [vmem:[%s192 + $0x8d8] sm:$0xff]
        %v936 = vld [vmem:[%s192 + $0x8e0] sm:$0xff]
        %v937 = vld [vmem:[%s192 + $0x8e8] sm:$0xff]
        %v938 = vld [vmem:[%s192 + $0x8f0] sm:$0xff]
        %v939 = vld [vmem:[%s192 + $0x8f8] sm:$0xff]
        %v940 = vld [vmem:[%s192 + $0x900] sm:$0xff]
        %v941 = vld [vmem:[%s192 + $0x908] sm:$0xff]
        %v942 = vld [vmem:[%s192 + $0x910] sm:$0xff]
        %v943 = vld [vmem:[%s192 + $0x918] sm:$0xff]
        %v944 = vld [vmem:[%s192 + $0x920] sm:$0xff]
        %v945 = vld [vmem:[%s192 + $0x928] sm:$0xff]
        %v946 = vld [vmem:[%s192 + $0x930] sm:$0xff]
        %v947 = vld [vmem:[%s192 + $0x938] sm:$0xff]
        %v948 = vld [vmem:[%s192 + $0x940] sm:$0xff]
        %v949 = vld [vmem:[%s192 + $0x948] sm:$0xff]
        %v950 = vld [vmem:[%s192 + $0x950] sm:$0xff]
        %v951 = vld [vmem:[%s192 + $0x958] sm:$0xff]
        %v952 = vld [vmem:[%s192 + $0x960] sm:$0xff]
        %v953 = vld [vmem:[%s192 + $0x968] sm:$0xff]
        %v954 = vld [vmem:[%s192 + $0x970] sm:$0xff]
        %v955 = vld [vmem:[%s192 + $0x978] sm:$0xff]
        %v956 = vld [vmem:[%s192 + $0x980] sm:$0xff]
        %v957 = vld [vmem:[%s192 + $0x988] sm:$0xff]
        %v958 = vld [vmem:[%s192 + $0x990] sm:$0xff]
        %v959 = vld [vmem:[%s192 + $0x998] sm:$0xff]
        %v960 = vld [vmem:[%s192 + $0x9a0] sm:$0xff]
        %v961 = vld [vmem:[%s192 + $0x9a8] sm:$0xff]
        %v962 = vld [vmem:[%s192 + $0x9b0] sm:$0xff]
        %v963 = vld [vmem:[%s192 + $0x9b8] sm:$0xff]
        %v964 = vld [vmem:[%s192 + $0x9c0] sm:$0xff]
        %v965 = vld [vmem:[%s192 + $0x9c8] sm:$0xff]
        %v966 = vld [vmem:[%s192 + $0x9d0] sm:$0xff]
        %v967 = vld [vmem:[%s192 + $0x9d8] sm:$0xff]
        %v968 = vld [vmem:[%s192 + $0x9e0] sm:$0xff]
        %v969 = vld [vmem:[%s192 + $0x9e8] sm:$0xff]
        %v970 = vld [vmem:[%s192 + $0x9f0] sm:$0xff]
        %v971 = vld [vmem:[%s192 + $0x9f8] sm:$0xff]
        %v972 = vld [vmem:[%s192 + $0xa00] sm:$0xff]
        %v973 = vld [vmem:[%s192 + $0xa08] sm:$0xff]
        %v974 = vld [vmem:[%s192 + $0xa10] sm:$0xff]
        %v975 = vld [vmem:[%s192 + $0xa18] sm:$0xff]
        %v976 = vld [vmem:[%s192 + $0xa20] sm:$0xff]
        %v977 = vld [vmem:[%s192 + $0xa28] sm:$0xff]
        %v978 = vld [vmem:[%s192 + $0xa30] sm:$0xff]
        %v979 = vld [vmem:[%s192 + $0xa38] sm:$0xff]
        %v980 = vld [vmem:[%s192 + $0xa40] sm:$0xff]
        %v981 = vld [vmem:[%s192 + $0xa48] sm:$0xff]
        %v982 = vld [vmem:[%s192 + $0xa50] sm:$0xff]
        %v983 = vld [vmem:[%s192 + $0xa58] sm:$0xff]
        %v984 = vld [vmem:[%s192 + $0xa60] sm:$0xff]
        %v985 = vld [vmem:[%s192 + $0xa68] sm:$0xff]
        %v986 = vld [vmem:[%s192 + $0xa70] sm:$0xff]
        %v987 = vld [vmem:[%s192 + $0xa78] sm:$0xff]
        %v988 = vld [vmem:[%s192 + $0xa80] sm:$0xff]
        %v989 = vld [vmem:[%s192 + $0xa88] sm:$0xff]
        %v990 = vld [vmem:[%s192 + $0xa90] sm:$0xff]
        %v991 = vld [vmem:[%s192 + $0xa98] sm:$0xff]
        %v992 = vld [vmem:[%s192 + $0xaa0] sm:$0xff]
        %v993 = vld [vmem:[%s192 + $0xaa8] sm:$0xff]
        %v994 = vld [vmem:[%s192 + $0xab0] sm:$0xff]
        %v995 = vld [vmem:[%s192 + $0xab8] sm:$0xff]
        %v996 = vld [vmem:[%s192 + $0xac0] sm:$0xff]
        %v997 = vld [vmem:[%s192 + $0xac8] sm:$0xff]
        %v998 = vld [vmem:[%s192 + $0xad0] sm:$0xff]
        %v999 = vld [vmem:[%s192 + $0xad8] sm:$0xff]
        %v1000 = vld [vmem:[%s192 + $0xae0] sm:$0xff]
        %v1001 = vld [vmem:[%s192 + $0xae8] sm:$0xff]
        %v1002 = vld [vmem:[%s192 + $0xaf0] sm:$0xff]
        %v1003 = vld [vmem:[%s192 + $0xaf8] sm:$0xff]
        %v1004 = vld [vmem:[%s192 + $0xb00] sm:$0xff]
        %v1005 = vld [vmem:[%s192 + $0xb08] sm:$0xff]
        %v1006 = vld [vmem:[%s192 + $0xb10] sm:$0xff]
        %v1007 = vld [vmem:[%s192 + $0xb18] sm:$0xff]
        %v1008 = vld [vmem:[%s192 + $0xb20] sm:$0xff]
        %v1009 = vld [vmem:[%s192 + $0xb28] sm:$0xff]
        %v1010 = vld [vmem:[%s192 + $0xb30] sm:$0xff]
        %v1011 = vld [vmem:[%s192 + $0xb38] sm:$0xff]
        %v1012 = vld [vmem:[%s192 + $0xb40] sm:$0xff]
        %v1013 = vld [vmem:[%s192 + $0xb48] sm:$0xff]
        %v1014 = vld [vmem:[%s192 + $0xb50] sm:$0xff]
        %v1015 = vld [vmem:[%s192 + $0xb58] sm:$0xff]
        %v1016 = vld [vmem:[%s192 + $0xb60] sm:$0xff]
        %v1017 = vld [vmem:[%s192 + $0xb68] sm:$0xff]
        %v1018 = vld [vmem:[%s192 + $0xb70] sm:$0xff]
        %v1019 = vld [vmem:[%s192 + $0xb78] sm:$0xff]
        %v1020 = vld [vmem:[%s192 + $0xb80] sm:$0xff]
        %v1021 = vld [vmem:[%s192 + $0xb88] sm:$0xff]
        %v1022 = vld [vmem:[%s192 + $0xb90] sm:$0xff]
        %v1023 = vld [vmem:[%s192 + $0xb98] sm:$0xff]
        %v1024 = vld [vmem:[%s192 + $0xba0] sm:$0xff]
        %v1025 = vld [vmem:[%s192 + $0xba8] sm:$0xff]
        %v1026 = vld [vmem:[%s192 + $0xbb0] sm:$0xff]
        %v1027 = vld [vmem:[%s192 + $0xbb8] sm:$0xff]
        %v1028 = vld [vmem:[%s192 + $0xbc0] sm:$0xff]
        %v1029 = vld [vmem:[%s192 + $0xbc8] sm:$0xff]
        %v1030 = vld [vmem:[%s192 + $0xbd0] sm:$0xff]
        %v1031 = vld [vmem:[%s192 + $0xbd8] sm:$0xff]
        %v1032 = vld [vmem:[%s192 + $0xbe0] sm:$0xff]
        %v1033 = vld [vmem:[%s192 + $0xbe8] sm:$0xff]
        %v1034 = vld [vmem:[%s192 + $0xbf0] sm:$0xff]
        %v1035 = vld [vmem:[%s192 + $0xbf8] sm:$0xff]
        %v1036 = vld [vmem:[%s192 + $0xc00] sm:$0xff]
        %v1037 = vld [vmem:[%s192 + $0xc08] sm:$0xff]
        %v1038 = vld [vmem:[%s192 + $0xc10] sm:$0xff]
        %v1039 = vld [vmem:[%s192 + $0xc18] sm:$0xff]
        %v1040 = vld [vmem:[%s192 + $0xc20] sm:$0xff]
        %v1041 = vld [vmem:[%s192 + $0xc28] sm:$0xff]
        %v1042 = vld [vmem:[%s192 + $0xc30] sm:$0xff]
        %v1043 = vld [vmem:[%s192 + $0xc38] sm:$0xff]
        %v1044 = vld [vmem:[%s192 + $0xc40] sm:$0xff]
        %v1045 = vld [vmem:[%s192 + $0xc48] sm:$0xff]
        %v1046 = vld [vmem:[%s192 + $0xc50] sm:$0xff]
        %v1047 = vld [vmem:[%s192 + $0xc58] sm:$0xff]
        %v1048 = vld [vmem:[%s192 + $0xc60] sm:$0xff]
        %v1049 = vld [vmem:[%s192 + $0xc68] sm:$0xff]
        %v1050 = vld [vmem:[%s192 + $0xc70] sm:$0xff]
        %v1051 = vld [vmem:[%s192 + $0xc78] sm:$0xff]
        %v1052 = vld [vmem:[%s192 + $0xc80] sm:$0xff]
        %v1053 = vld [vmem:[%s192 + $0xc88] sm:$0xff]
        %v1054 = vld [vmem:[%s192 + $0xc90] sm:$0xff]
        %v1055 = vld [vmem:[%s192 + $0xc98] sm:$0xff]
        %v1056 = vld [vmem:[%s192 + $0xca0] sm:$0xff]
        %v1057 = vld [vmem:[%s192 + $0xca8] sm:$0xff]
        %v1058 = vld [vmem:[%s192 + $0xcb0] sm:$0xff]
        %v1059 = vld [vmem:[%s192 + $0xcb8] sm:$0xff]
        %v1060 = vld [vmem:[%s192 + $0xcc0] sm:$0xff]
        %v1061 = vld [vmem:[%s192 + $0xcc8] sm:$0xff]
        %v1062 = vld [vmem:[%s192 + $0xcd0] sm:$0xff]
        %v1063 = vld [vmem:[%s192 + $0xcd8] sm:$0xff]
        %v1064 = vld [vmem:[%s192 + $0xce0] sm:$0xff]
        %v1065 = vld [vmem:[%s192 + $0xce8] sm:$0xff]
        %v1066 = vld [vmem:[%s192 + $0xcf0] sm:$0xff]
        %v1067 = vld [vmem:[%s192 + $0xcf8] sm:$0xff]
        %v1068 = vadd.f32 %v236, %v652
        %v1069 = vadd.f32 %v237, %v653
        %v1070 = vadd.f32 %v238, %v654
        %v1071 = vadd.f32 %v239, %v655
        %v1072 = vadd.f32 %v240, %v656
        %v1073 = vadd.f32 %v241, %v657
        %v1074 = vadd.f32 %v242, %v658
        %v1075 = vadd.f32 %v243, %v659
        %v1076 = vadd.f32 %v244, %v660
        %v1077 = vadd.f32 %v245, %v661
        %v1078 = vadd.f32 %v246, %v662
        %v1079 = vadd.f32 %v247, %v663
        %v1080 = vadd.f32 %v248, %v664
        %v1081 = vadd.f32 %v249, %v665
        %v1082 = vadd.f32 %v250, %v666
        %v1083 = vadd.f32 %v251, %v667
        %v1084 = vadd.f32 %v252, %v668
        %v1085 = vadd.f32 %v253, %v669
        %v1086 = vadd.f32 %v254, %v670
        %v1087 = vadd.f32 %v255, %v671
        %v1088 = vadd.f32 %v256, %v672
        %v1089 = vadd.f32 %v257, %v673
        %v1090 = vadd.f32 %v258, %v674
        %v1091 = vadd.f32 %v259, %v675
        %v1092 = vadd.f32 %v260, %v676
        %v1093 = vadd.f32 %v261, %v677
        %v1094 = vadd.f32 %v262, %v678
        %v1095 = vadd.f32 %v263, %v679
        %v1096 = vadd.f32 %v264, %v680
        %v1097 = vadd.f32 %v265, %v681
        %v1098 = vadd.f32 %v266, %v682
        %v1099 = vadd.f32 %v267, %v683
        %v1100 = vadd.f32 %v268, %v684
        %v1101 = vadd.f32 %v269, %v685
        %v1102 = vadd.f32 %v270, %v686
        %v1103 = vadd.f32 %v271, %v687
        %v1104 = vadd.f32 %v272, %v688
        %v1105 = vadd.f32 %v273, %v689
        %v1106 = vadd.f32 %v274, %v690
        %v1107 = vadd.f32 %v275, %v691
        %v1108 = vadd.f32 %v276, %v692
        %v1109 = vadd.f32 %v277, %v693
        %v1110 = vadd.f32 %v278, %v694
        %v1111 = vadd.f32 %v279, %v695
        %v1112 = vadd.f32 %v280, %v696
        %v1113 = vadd.f32 %v281, %v697
        %v1114 = vadd.f32 %v282, %v698
        %v1115 = vadd.f32 %v283, %v699
        %v1116 = vadd.f32 %v284, %v700
        %v1117 = vadd.f32 %v285, %v701
        %v1118 = vadd.f32 %v286, %v702
        %v1119 = vadd.f32 %v287, %v703
        %v1120 = vadd.f32 %v288, %v704
        %v1121 = vadd.f32 %v289, %v705
        %v1122 = vadd.f32 %v290, %v706
        %v1123 = vadd.f32 %v291, %v707
        %v1124 = vadd.f32 %v292, %v708
        %v1125 = vadd.f32 %v293, %v709
        %v1126 = vadd.f32 %v294, %v710
        %v1127 = vadd.f32 %v295, %v711
        %v1128 = vadd.f32 %v296, %v712
        %v1129 = vadd.f32 %v297, %v713
        %v1130 = vadd.f32 %v298, %v714
        %v1131 = vadd.f32 %v299, %v715
        %v1132 = vadd.f32 %v300, %v716
        %v1133 = vadd.f32 %v301, %v717
        %v1134 = vadd.f32 %v302, %v718
        %v1135 = vadd.f32 %v303, %v719
        %v1136 = vadd.f32 %v304, %v720
        %v1137 = vadd.f32 %v305, %v721
        %v1138 = vadd.f32 %v306, %v722
        %v1139 = vadd.f32 %v307, %v723
        %v1140 = vadd.f32 %v308, %v724
        %v1141 = vadd.f32 %v309, %v725
        %v1142 = vadd.f32 %v310, %v726
        %v1143 = vadd.f32 %v311, %v727
        %v1144 = vadd.f32 %v312, %v728
        %v1145 = vadd.f32 %v313, %v729
        %v1146 = vadd.f32 %v314, %v730
        %v1147 = vadd.f32 %v315, %v731
        %v1148 = vadd.f32 %v316, %v732
        %v1149 = vadd.f32 %v317, %v733
        %v1150 = vadd.f32 %v318, %v734
        %v1151 = vadd.f32 %v319, %v735
        %v1152 = vadd.f32 %v320, %v736
        %v1153 = vadd.f32 %v321, %v737
        %v1154 = vadd.f32 %v322, %v738
        %v1155 = vadd.f32 %v323, %v739
        %v1156 = vadd.f32 %v324, %v740
        %v1157 = vadd.f32 %v325, %v741
        %v1158 = vadd.f32 %v326, %v742
        %v1159 = vadd.f32 %v327, %v743
        %v1160 = vadd.f32 %v328, %v744
        %v1161 = vadd.f32 %v329, %v745
        %v1162 = vadd.f32 %v330, %v746
        %v1163 = vadd.f32 %v331, %v747
        %v1164 = vadd.f32 %v332, %v748
        %v1165 = vadd.f32 %v333, %v749
        %v1166 = vadd.f32 %v334, %v750
        %v1167 = vadd.f32 %v335, %v751
        %v1168 = vadd.f32 %v336, %v752
        %v1169 = vadd.f32 %v337, %v753
        %v1170 = vadd.f32 %v338, %v754
        %v1171 = vadd.f32 %v339, %v755
        %v1172 = vadd.f32 %v340, %v756
        %v1173 = vadd.f32 %v341, %v757
        %v1174 = vadd.f32 %v342, %v758
        %v1175 = vadd.f32 %v343, %v759
        %v1176 = vadd.f32 %v344, %v760
        %v1177 = vadd.f32 %v345, %v761
        %v1178 = vadd.f32 %v346, %v762
        %v1179 = vadd.f32 %v347, %v763
        %v1180 = vadd.f32 %v348, %v764
        %v1181 = vadd.f32 %v349, %v765
        %v1182 = vadd.f32 %v350, %v766
        %v1183 = vadd.f32 %v351, %v767
        %v1184 = vadd.f32 %v352, %v768
        %v1185 = vadd.f32 %v353, %v769
        %v1186 = vadd.f32 %v354, %v770
        %v1187 = vadd.f32 %v355, %v771
        %v1188 = vadd.f32 %v356, %v772
        %v1189 = vadd.f32 %v357, %v773
        %v1190 = vadd.f32 %v358, %v774
        %v1191 = vadd.f32 %v359, %v775
        %v1192 = vadd.f32 %v360, %v776
        %v1193 = vadd.f32 %v361, %v777
        %v1194 = vadd.f32 %v362, %v778
        %v1195 = vadd.f32 %v363, %v779
        %v1196 = vadd.f32 %v364, %v780
        %v1197 = vadd.f32 %v365, %v781
        %v1198 = vadd.f32 %v366, %v782
        %v1199 = vadd.f32 %v367, %v783
        %v1200 = vadd.f32 %v368, %v784
        %v1201 = vadd.f32 %v369, %v785
        %v1202 = vadd.f32 %v370, %v786
        %v1203 = vadd.f32 %v371, %v787
        %v1204 = vadd.f32 %v372, %v788
        %v1205 = vadd.f32 %v373, %v789
        %v1206 = vadd.f32 %v374, %v790
        %v1207 = vadd.f32 %v375, %v791
        %v1208 = vadd.f32 %v376, %v792
        %v1209 = vadd.f32 %v377, %v793
        %v1210 = vadd.f32 %v378, %v794
        %v1211 = vadd.f32 %v379, %v795
        %v1212 = vadd.f32 %v380, %v796
        %v1213 = vadd.f32 %v381, %v797
        %v1214 = vadd.f32 %v382, %v798
        %v1215 = vadd.f32 %v383, %v799
        %v1216 = vadd.f32 %v384, %v800
        %v1217 = vadd.f32 %v385, %v801
        %v1218 = vadd.f32 %v386, %v802
        %v1219 = vadd.f32 %v387, %v803
        %v1220 = vadd.f32 %v388, %v804
        %v1221 = vadd.f32 %v389, %v805
        %v1222 = vadd.f32 %v390, %v806
        %v1223 = vadd.f32 %v391, %v807
        %v1224 = vadd.f32 %v392, %v808
        %v1225 = vadd.f32 %v393, %v809
        %v1226 = vadd.f32 %v394, %v810
        %v1227 = vadd.f32 %v395, %v811
        %v1228 = vadd.f32 %v396, %v812
        %v1229 = vadd.f32 %v397, %v813
        %v1230 = vadd.f32 %v398, %v814
        %v1231 = vadd.f32 %v399, %v815
        %v1232 = vadd.f32 %v400, %v816
        %v1233 = vadd.f32 %v401, %v817
        %v1234 = vadd.f32 %v402, %v818
        %v1235 = vadd.f32 %v403, %v819
        %v1236 = vadd.f32 %v404, %v820
        %v1237 = vadd.f32 %v405, %v821
        %v1238 = vadd.f32 %v406, %v822
        %v1239 = vadd.f32 %v407, %v823
        %v1240 = vadd.f32 %v408, %v824
        %v1241 = vadd.f32 %v409, %v825
        %v1242 = vadd.f32 %v410, %v826
        %v1243 = vadd.f32 %v411, %v827
        %v1244 = vadd.f32 %v412, %v828
        %v1245 = vadd.f32 %v413, %v829
        %v1246 = vadd.f32 %v414, %v830
        %v1247 = vadd.f32 %v415, %v831
        %v1248 = vadd.f32 %v416, %v832
        %v1249 = vadd.f32 %v417, %v833
        %v1250 = vadd.f32 %v418, %v834
        %v1251 = vadd.f32 %v419, %v835
        %v1252 = vadd.f32 %v420, %v836
        %v1253 = vadd.f32 %v421, %v837
        %v1254 = vadd.f32 %v422, %v838
        %v1255 = vadd.f32 %v423, %v839
        %v1256 = vadd.f32 %v424, %v840
        %v1257 = vadd.f32 %v425, %v841
        %v1258 = vadd.f32 %v426, %v842
        %v1259 = vadd.f32 %v427, %v843
        %v1260 = vadd.f32 %v428, %v844
        %v1261 = vadd.f32 %v429, %v845
        %v1262 = vadd.f32 %v430, %v846
        %v1263 = vadd.f32 %v431, %v847
        %v1264 = vadd.f32 %v432, %v848
        %v1265 = vadd.f32 %v433, %v849
        %v1266 = vadd.f32 %v434, %v850
        %v1267 = vadd.f32 %v435, %v851
        %v1268 = vadd.f32 %v436, %v852
        %v1269 = vadd.f32 %v437, %v853
        %v1270 = vadd.f32 %v438, %v854
        %v1271 = vadd.f32 %v439, %v855
        %v1272 = vadd.f32 %v440, %v856
        %v1273 = vadd.f32 %v441, %v857
        %v1274 = vadd.f32 %v442, %v858
        %v1275 = vadd.f32 %v443, %v859
        %v1276 = vadd.f32 %v444, %v860
        %v1277 = vadd.f32 %v445, %v861
        %v1278 = vadd.f32 %v446, %v862
        %v1279 = vadd.f32 %v447, %v863
        %v1280 = vadd.f32 %v448, %v864
        %v1281 = vadd.f32 %v449, %v865
        %v1282 = vadd.f32 %v450, %v866
        %v1283 = vadd.f32 %v451, %v867
        %v1284 = vadd.f32 %v452, %v868
        %v1285 = vadd.f32 %v453, %v869
        %v1286 = vadd.f32 %v454, %v870
        %v1287 = vadd.f32 %v455, %v871
        %v1288 = vadd.f32 %v456, %v872
        %v1289 = vadd.f32 %v457, %v873
        %v1290 = vadd.f32 %v458, %v874
        %v1291 = vadd.f32 %v459, %v875
        %v1292 = vadd.f32 %v460, %v876
        %v1293 = vadd.f32 %v461, %v877
        %v1294 = vadd.f32 %v462, %v878
        %v1295 = vadd.f32 %v463, %v879
        %v1296 = vadd.f32 %v464, %v880
        %v1297 = vadd.f32 %v465, %v881
        %v1298 = vadd.f32 %v466, %v882
        %v1299 = vadd.f32 %v467, %v883
        %v1300 = vadd.f32 %v468, %v884
        %v1301 = vadd.f32 %v469, %v885
        %v1302 = vadd.f32 %v470, %v886
        %v1303 = vadd.f32 %v471, %v887
        %v1304 = vadd.f32 %v472, %v888
        %v1305 = vadd.f32 %v473, %v889
        %v1306 = vadd.f32 %v474, %v890
        %v1307 = vadd.f32 %v475, %v891
        %v1308 = vadd.f32 %v476, %v892
        %v1309 = vadd.f32 %v477, %v893
        %v1310 = vadd.f32 %v478, %v894
        %v1311 = vadd.f32 %v479, %v895
        %v1312 = vadd.f32 %v480, %v896
        %v1313 = vadd.f32 %v481, %v897
        %v1314 = vadd.f32 %v482, %v898
        %v1315 = vadd.f32 %v483, %v899
        %v1316 = vadd.f32 %v484, %v900
        %v1317 = vadd.f32 %v485, %v901
        %v1318 = vadd.f32 %v486, %v902
        %v1319 = vadd.f32 %v487, %v903
        %v1320 = vadd.f32 %v488, %v904
        %v1321 = vadd.f32 %v489, %v905
        %v1322 = vadd.f32 %v490, %v906
        %v1323 = vadd.f32 %v491, %v907
        %v1324 = vadd.f32 %v492, %v908
        %v1325 = vadd.f32 %v493, %v909
        %v1326 = vadd.f32 %v494, %v910
        %v1327 = vadd.f32 %v495, %v911
        %v1328 = vadd.f32 %v496, %v912
        %v1329 = vadd.f32 %v497, %v913
        %v1330 = vadd.f32 %v498, %v914
        %v1331 = vadd.f32 %v499, %v915
        %v1332 = vadd.f32 %v500, %v916
        %v1333 = vadd.f32 %v501, %v917
        %v1334 = vadd.f32 %v502, %v918
        %v1335 = vadd.f32 %v503, %v919
        %v1336 = vadd.f32 %v504, %v920
        %v1337 = vadd.f32 %v505, %v921
        %v1338 = vadd.f32 %v506, %v922
        %v1339 = vadd.f32 %v507, %v923
        %v1340 = vadd.f32 %v508, %v924
        %v1341 = vadd.f32 %v509, %v925
        %v1342 = vadd.f32 %v510, %v926
        %v1343 = vadd.f32 %v511, %v927
        %v1344 = vadd.f32 %v512, %v928
        %v1345 = vadd.f32 %v513, %v929
        %v1346 = vadd.f32 %v514, %v930
        %v1347 = vadd.f32 %v515, %v931
        %v1348 = vadd.f32 %v516, %v932
        %v1349 = vadd.f32 %v517, %v933
        %v1350 = vadd.f32 %v518, %v934
        %v1351 = vadd.f32 %v519, %v935
        %v1352 = vadd.f32 %v520, %v936
        %v1353 = vadd.f32 %v521, %v937
        %v1354 = vadd.f32 %v522, %v938
        %v1355 = vadd.f32 %v523, %v939
        %v1356 = vadd.f32 %v524, %v940
        %v1357 = vadd.f32 %v525, %v941
        %v1358 = vadd.f32 %v526, %v942
        %v1359 = vadd.f32 %v527, %v943
        %v1360 = vadd.f32 %v528, %v944
        %v1361 = vadd.f32 %v529, %v945
        %v1362 = vadd.f32 %v530, %v946
        %v1363 = vadd.f32 %v531, %v947
        %v1364 = vadd.f32 %v532, %v948
        %v1365 = vadd.f32 %v533, %v949
        %v1366 = vadd.f32 %v534, %v950
        %v1367 = vadd.f32 %v535, %v951
        %v1368 = vadd.f32 %v536, %v952
        %v1369 = vadd.f32 %v537, %v953
        %v1370 = vadd.f32 %v538, %v954
        %v1371 = vadd.f32 %v539, %v955
        %v1372 = vadd.f32 %v540, %v956
        %v1373 = vadd.f32 %v541, %v957
        %v1374 = vadd.f32 %v542, %v958
        %v1375 = vadd.f32 %v543, %v959
        %v1376 = vadd.f32 %v544, %v960
        %v1377 = vadd.f32 %v545, %v961
        %v1378 = vadd.f32 %v546, %v962
        %v1379 = vadd.f32 %v547, %v963
        %v1380 = vadd.f32 %v548, %v964
        %v1381 = vadd.f32 %v549, %v965
        %v1382 = vadd.f32 %v550, %v966
        %v1383 = vadd.f32 %v551, %v967
        %v1384 = vadd.f32 %v552, %v968
        %v1385 = vadd.f32 %v553, %v969
        %v1386 = vadd.f32 %v554, %v970
        %v1387 = vadd.f32 %v555, %v971
        %v1388 = vadd.f32 %v556, %v972
        %v1389 = vadd.f32 %v557, %v973
        %v1390 = vadd.f32 %v558, %v974
        %v1391 = vadd.f32 %v559, %v975
        %v1392 = vadd.f32 %v560, %v976
        %v1393 = vadd.f32 %v561, %v977
        %v1394 = vadd.f32 %v562, %v978
        %v1395 = vadd.f32 %v563, %v979
        %v1396 = vadd.f32 %v564, %v980
        %v1397 = vadd.f32 %v565, %v981
        %v1398 = vadd.f32 %v566, %v982
        %v1399 = vadd.f32 %v567, %v983
        %v1400 = vadd.f32 %v568, %v984
        %v1401 = vadd.f32 %v569, %v985
        %v1402 = vadd.f32 %v570, %v986
        %v1403 = vadd.f32 %v571, %v987
        %v1404 = vadd.f32 %v572, %v988
        %v1405 = vadd.f32 %v573, %v989
        %v1406 = vadd.f32 %v574, %v990
        %v1407 = vadd.f32 %v575, %v991
        %v1408 = vadd.f32 %v576, %v992
        %v1409 = vadd.f32 %v577, %v993
        %v1410 = vadd.f32 %v578, %v994
        %v1411 = vadd.f32 %v579, %v995
        %v1412 = vadd.f32 %v580, %v996
        %v1413 = vadd.f32 %v581, %v997
        %v1414 = vadd.f32 %v582, %v998
        %v1415 = vadd.f32 %v583, %v999
        %v1416 = vadd.f32 %v584, %v1000
        %v1417 = vadd.f32 %v585, %v1001
        %v1418 = vadd.f32 %v586, %v1002
        %v1419 = vadd.f32 %v587, %v1003
        %v1420 = vadd.f32 %v588, %v1004
        %v1421 = vadd.f32 %v589, %v1005
        %v1422 = vadd.f32 %v590, %v1006
        %v1423 = vadd.f32 %v591, %v1007
        %v1424 = vadd.f32 %v592, %v1008
        %v1425 = vadd.f32 %v593, %v1009
        %v1426 = vadd.f32 %v594, %v1010
        %v1427 = vadd.f32 %v595, %v1011
        %v1428 = vadd.f32 %v596, %v1012
        %v1429 = vadd.f32 %v597, %v1013
        %v1430 = vadd.f32 %v598, %v1014
        %v1431 = vadd.f32 %v599, %v1015
        %v1432 = vadd.f32 %v600, %v1016
        %v1433 = vadd.f32 %v601, %v1017
        %v1434 = vadd.f32 %v602, %v1018
        %v1435 = vadd.f32 %v603, %v1019
        %v1436 = vadd.f32 %v604, %v1020
        %v1437 = vadd.f32 %v605, %v1021
        %v1438 = vadd.f32 %v606, %v1022
        %v1439 = vadd.f32 %v607, %v1023
        %v1440 = vadd.f32 %v608, %v1024
        %v1441 = vadd.f32 %v609, %v1025
        %v1442 = vadd.f32 %v610, %v1026
        %v1443 = vadd.f32 %v611, %v1027
        %v1444 = vadd.f32 %v612, %v1028
        %v1445 = vadd.f32 %v613, %v1029
        %v1446 = vadd.f32 %v614, %v1030
        %v1447 = vadd.f32 %v615, %v1031
        %v1448 = vadd.f32 %v616, %v1032
        %v1449 = vadd.f32 %v617, %v1033
        %v1450 = vadd.f32 %v618, %v1034
        %v1451 = vadd.f32 %v619, %v1035
        %v1452 = vadd.f32 %v620, %v1036
        %v1453 = vadd.f32 %v621, %v1037
        %v1454 = vadd.f32 %v622, %v1038
        %v1455 = vadd.f32 %v623, %v1039
        %v1456 = vadd.f32 %v624, %v1040
        %v1457 = vadd.f32 %v625, %v1041
        %v1458 = vadd.f32 %v626, %v1042
        %v1459 = vadd.f32 %v627, %v1043
        %v1460 = vadd.f32 %v628, %v1044
        %v1461 = vadd.f32 %v629, %v1045
        %v1462 = vadd.f32 %v630, %v1046
        %v1463 = vadd.f32 %v631, %v1047
        %v1464 = vadd.f32 %v632, %v1048
        %v1465 = vadd.f32 %v633, %v1049
        %v1466 = vadd.f32 %v634, %v1050
        %v1467 = vadd.f32 %v635, %v1051
        %v1468 = vadd.f32 %v636, %v1052
        %v1469 = vadd.f32 %v637, %v1053
        %v1470 = vadd.f32 %v638, %v1054
        %v1471 = vadd.f32 %v639, %v1055
        %v1472 = vadd.f32 %v640, %v1056
        %v1473 = vadd.f32 %v641, %v1057
        %v1474 = vadd.f32 %v642, %v1058
        %v1475 = vadd.f32 %v643, %v1059
        %v1476 = vadd.f32 %v644, %v1060
        %v1477 = vadd.f32 %v645, %v1061
        %v1478 = vadd.f32 %v646, %v1062
        %v1479 = vadd.f32 %v647, %v1063
        %v1480 = vadd.f32 %v648, %v1064
        %v1481 = vadd.f32 %v649, %v1065
        %v1482 = vadd.f32 %v650, %v1066
        %v1483 = vadd.f32 %v651, %v1067
        %v1484 = vmax.f32 %v1068, 0.0
        %v1485 = vmax.f32 %v1069, 0.0
        %v1486 = vmax.f32 %v1070, 0.0
        %v1487 = vmax.f32 %v1071, 0.0
        %v1488 = vmax.f32 %v1072, 0.0
        %v1489 = vmax.f32 %v1073, 0.0
        %v1490 = vmax.f32 %v1074, 0.0
        %v1491 = vmax.f32 %v1075, 0.0
        %v1492 = vmax.f32 %v1076, 0.0
        %v1493 = vmax.f32 %v1077, 0.0
        %v1494 = vmax.f32 %v1078, 0.0
        %v1495 = vmax.f32 %v1079, 0.0
        %v1496 = vmax.f32 %v1080, 0.0
        %v1497 = vmax.f32 %v1081, 0.0
        %v1498 = vmax.f32 %v1082, 0.0
        %v1499 = vmax.f32 %v1083, 0.0
        %v1500 = vmax.f32 %v1084, 0.0
        %v1501 = vmax.f32 %v1085, 0.0
        %v1502 = vmax.f32 %v1086, 0.0
        %v1503 = vmax.f32 %v1087, 0.0
        %v1504 = vmax.f32 %v1088, 0.0
        %v1505 = vmax.f32 %v1089, 0.0
        %v1506 = vmax.f32 %v1090, 0.0
        %v1507 = vmax.f32 %v1091, 0.0
        %v1508 = vmax.f32 %v1092, 0.0
        %v1509 = vmax.f32 %v1093, 0.0
        %v1510 = vmax.f32 %v1094, 0.0
        %v1511 = vmax.f32 %v1095, 0.0
        %v1512 = vmax.f32 %v1096, 0.0
        %v1513 = vmax.f32 %v1097, 0.0
        %v1514 = vmax.f32 %v1098, 0.0
        %v1515 = vmax.f32 %v1099, 0.0
        %v1516 = vmax.f32 %v1100, 0.0
        %v1517 = vmax.f32 %v1101, 0.0
        %v1518 = vmax.f32 %v1102, 0.0
        %v1519 = vmax.f32 %v1103, 0.0
        %v1520 = vmax.f32 %v1104, 0.0
        %v1521 = vmax.f32 %v1105, 0.0
        %v1522 = vmax.f32 %v1106, 0.0
        %v1523 = vmax.f32 %v1107, 0.0
        %v1524 = vmax.f32 %v1108, 0.0
        %v1525 = vmax.f32 %v1109, 0.0
        %v1526 = vmax.f32 %v1110, 0.0
        %v1527 = vmax.f32 %v1111, 0.0
        %v1528 = vmax.f32 %v1112, 0.0
        %v1529 = vmax.f32 %v1113, 0.0
        %v1530 = vmax.f32 %v1114, 0.0
        %v1531 = vmax.f32 %v1115, 0.0
        %v1532 = vmax.f32 %v1116, 0.0
        %v1533 = vmax.f32 %v1117, 0.0
        %v1534 = vmax.f32 %v1118, 0.0
        %v1535 = vmax.f32 %v1119, 0.0
        %v1536 = vmax.f32 %v1120, 0.0
        %v1537 = vmax.f32 %v1121, 0.0
        %v1538 = vmax.f32 %v1122, 0.0
        %v1539 = vmax.f32 %v1123, 0.0
        %v1540 = vmax.f32 %v1124, 0.0
        %v1541 = vmax.f32 %v1125, 0.0
        %v1542 = vmax.f32 %v1126, 0.0
        %v1543 = vmax.f32 %v1127, 0.0
        %v1544 = vmax.f32 %v1128, 0.0
        %v1545 = vmax.f32 %v1129, 0.0
        %v1546 = vmax.f32 %v1130, 0.0
        %v1547 = vmax.f32 %v1131, 0.0
        %v1548 = vmax.f32 %v1132, 0.0
        %v1549 = vmax.f32 %v1133, 0.0
        %v1550 = vmax.f32 %v1134, 0.0
        %v1551 = vmax.f32 %v1135, 0.0
        %v1552 = vmax.f32 %v1136, 0.0
        %v1553 = vmax.f32 %v1137, 0.0
        %v1554 = vmax.f32 %v1138, 0.0
        %v1555 = vmax.f32 %v1139, 0.0
        %v1556 = vmax.f32 %v1140, 0.0
        %v1557 = vmax.f32 %v1141, 0.0
        %v1558 = vmax.f32 %v1142, 0.0
        %v1559 = vmax.f32 %v1143, 0.0
        %v1560 = vmax.f32 %v1144, 0.0
        %v1561 = vmax.f32 %v1145, 0.0
        %v1562 = vmax.f32 %v1146, 0.0
        %v1563 = vmax.f32 %v1147, 0.0
        %v1564 = vmax.f32 %v1148, 0.0
        %v1565 = vmax.f32 %v1149, 0.0
        %v1566 = vmax.f32 %v1150, 0.0
        %v1567 = vmax.f32 %v1151, 0.0
        %v1568 = vmax.f32 %v1152, 0.0
        %v1569 = vmax.f32 %v1153, 0.0
        %v1570 = vmax.f32 %v1154, 0.0
        %v1571 = vmax.f32 %v1155, 0.0
        %v1572 = vmax.f32 %v1156, 0.0
        %v1573 = vmax.f32 %v1157, 0.0
        %v1574 = vmax.f32 %v1158, 0.0
        %v1575 = vmax.f32 %v1159, 0.0
        %v1576 = vmax.f32 %v1160, 0.0
        %v1577 = vmax.f32 %v1161, 0.0
        %v1578 = vmax.f32 %v1162, 0.0
        %v1579 = vmax.f32 %v1163, 0.0
        %v1580 = vmax.f32 %v1164, 0.0
        %v1581 = vmax.f32 %v1165, 0.0
        %v1582 = vmax.f32 %v1166, 0.0
        %v1583 = vmax.f32 %v1167, 0.0
        %v1584 = vmax.f32 %v1168, 0.0
        %v1585 = vmax.f32 %v1169, 0.0
        %v1586 = vmax.f32 %v1170, 0.0
        %v1587 = vmax.f32 %v1171, 0.0
        %v1588 = vmax.f32 %v1172, 0.0
        %v1589 = vmax.f32 %v1173, 0.0
        %v1590 = vmax.f32 %v1174, 0.0
        %v1591 = vmax.f32 %v1175, 0.0
        %v1592 = vmax.f32 %v1176, 0.0
        %v1593 = vmax.f32 %v1177, 0.0
        %v1594 = vmax.f32 %v1178, 0.0
        %v1595 = vmax.f32 %v1179, 0.0
        %v1596 = vmax.f32 %v1180, 0.0
        %v1597 = vmax.f32 %v1181, 0.0
        %v1598 = vmax.f32 %v1182, 0.0
        %v1599 = vmax.f32 %v1183, 0.0
        %v1600 = vmax.f32 %v1184, 0.0
        %v1601 = vmax.f32 %v1185, 0.0
        %v1602 = vmax.f32 %v1186, 0.0
        %v1603 = vmax.f32 %v1187, 0.0
        %v1604 = vmax.f32 %v1188, 0.0
        %v1605 = vmax.f32 %v1189, 0.0
        %v1606 = vmax.f32 %v1190, 0.0
        %v1607 = vmax.f32 %v1191, 0.0
        %v1608 = vmax.f32 %v1192, 0.0
        %v1609 = vmax.f32 %v1193, 0.0
        %v1610 = vmax.f32 %v1194, 0.0
        %v1611 = vmax.f32 %v1195, 0.0
        %v1612 = vmax.f32 %v1196, 0.0
        %v1613 = vmax.f32 %v1197, 0.0
        %v1614 = vmax.f32 %v1198, 0.0
        %v1615 = vmax.f32 %v1199, 0.0
        %v1616 = vmax.f32 %v1200, 0.0
        %v1617 = vmax.f32 %v1201, 0.0
        %v1618 = vmax.f32 %v1202, 0.0
        %v1619 = vmax.f32 %v1203, 0.0
        %v1620 = vmax.f32 %v1204, 0.0
        %v1621 = vmax.f32 %v1205, 0.0
        %v1622 = vmax.f32 %v1206, 0.0
        %v1623 = vmax.f32 %v1207, 0.0
        %v1624 = vmax.f32 %v1208, 0.0
        %v1625 = vmax.f32 %v1209, 0.0
        %v1626 = vmax.f32 %v1210, 0.0
        %v1627 = vmax.f32 %v1211, 0.0
        %v1628 = vmax.f32 %v1212, 0.0
        %v1629 = vmax.f32 %v1213, 0.0
        %v1630 = vmax.f32 %v1214, 0.0
        %v1631 = vmax.f32 %v1215, 0.0
        %v1632 = vmax.f32 %v1216, 0.0
        %v1633 = vmax.f32 %v1217, 0.0
        %v1634 = vmax.f32 %v1218, 0.0
        %v1635 = vmax.f32 %v1219, 0.0
        %v1636 = vmax.f32 %v1220, 0.0
        %v1637 = vmax.f32 %v1221, 0.0
        %v1638 = vmax.f32 %v1222, 0.0
        %v1639 = vmax.f32 %v1223, 0.0
        %v1640 = vmax.f32 %v1224, 0.0
        %v1641 = vmax.f32 %v1225, 0.0
        %v1642 = vmax.f32 %v1226, 0.0
        %v1643 = vmax.f32 %v1227, 0.0
        %v1644 = vmax.f32 %v1228, 0.0
        %v1645 = vmax.f32 %v1229, 0.0
        %v1646 = vmax.f32 %v1230, 0.0
        %v1647 = vmax.f32 %v1231, 0.0
        %v1648 = vmax.f32 %v1232, 0.0
        %v1649 = vmax.f32 %v1233, 0.0
        %v1650 = vmax.f32 %v1234, 0.0
        %v1651 = vmax.f32 %v1235, 0.0
        %v1652 = vmax.f32 %v1236, 0.0
        %v1653 = vmax.f32 %v1237, 0.0
        %v1654 = vmax.f32 %v1238, 0.0
        %v1655 = vmax.f32 %v1239, 0.0
        %v1656 = vmax.f32 %v1240, 0.0
        %v1657 = vmax.f32 %v1241, 0.0
        %v1658 = vmax.f32 %v1242, 0.0
        %v1659 = vmax.f32 %v1243, 0.0
        %v1660 = vmax.f32 %v1244, 0.0
        %v1661 = vmax.f32 %v1245, 0.0
        %v1662 = vmax.f32 %v1246, 0.0
        %v1663 = vmax.f32 %v1247, 0.0
        %v1664 = vmax.f32 %v1248, 0.0
        %v1665 = vmax.f32 %v1249, 0.0
        %v1666 = vmax.f32 %v1250, 0.0
        %v1667 = vmax.f32 %v1251, 0.0
        %v1668 = vmax.f32 %v1252, 0.0
        %v1669 = vmax.f32 %v1253, 0.0
        %v1670 = vmax.f32 %v1254, 0.0
        %v1671 = vmax.f32 %v1255, 0.0
        %v1672 = vmax.f32 %v1256, 0.0
        %v1673 = vmax.f32 %v1257, 0.0
        %v1674 = vmax.f32 %v1258, 0.0
        %v1675 = vmax.f32 %v1259, 0.0
        %v1676 = vmax.f32 %v1260, 0.0
        %v1677 = vmax.f32 %v1261, 0.0
        %v1678 = vmax.f32 %v1262, 0.0
        %v1679 = vmax.f32 %v1263, 0.0
        %v1680 = vmax.f32 %v1264, 0.0
        %v1681 = vmax.f32 %v1265, 0.0
        %v1682 = vmax.f32 %v1266, 0.0
        %v1683 = vmax.f32 %v1267, 0.0
        %v1684 = vmax.f32 %v1268, 0.0
        %v1685 = vmax.f32 %v1269, 0.0
        %v1686 = vmax.f32 %v1270, 0.0
        %v1687 = vmax.f32 %v1271, 0.0
        %v1688 = vmax.f32 %v1272, 0.0
        %v1689 = vmax.f32 %v1273, 0.0
        %v1690 = vmax.f32 %v1274, 0.0
        %v1691 = vmax.f32 %v1275, 0.0
        %v1692 = vmax.f32 %v1276, 0.0
        %v1693 = vmax.f32 %v1277, 0.0
        %v1694 = vmax.f32 %v1278, 0.0
        %v1695 = vmax.f32 %v1279, 0.0
        %v1696 = vmax.f32 %v1280, 0.0
        %v1697 = vmax.f32 %v1281, 0.0
        %v1698 = vmax.f32 %v1282, 0.0
        %v1699 = vmax.f32 %v1283, 0.0
        %v1700 = vmax.f32 %v1284, 0.0
        %v1701 = vmax.f32 %v1285, 0.0
        %v1702 = vmax.f32 %v1286, 0.0
        %v1703 = vmax.f32 %v1287, 0.0
        %v1704 = vmax.f32 %v1288, 0.0
        %v1705 = vmax.f32 %v1289, 0.0
        %v1706 = vmax.f32 %v1290, 0.0
        %v1707 = vmax.f32 %v1291, 0.0
        %v1708 = vmax.f32 %v1292, 0.0
        %v1709 = vmax.f32 %v1293, 0.0
        %v1710 = vmax.f32 %v1294, 0.0
        %v1711 = vmax.f32 %v1295, 0.0
        %v1712 = vmax.f32 %v1296, 0.0
        %v1713 = vmax.f32 %v1297, 0.0
        %v1714 = vmax.f32 %v1298, 0.0
        %v1715 = vmax.f32 %v1299, 0.0
        %v1716 = vmax.f32 %v1300, 0.0
        %v1717 = vmax.f32 %v1301, 0.0
        %v1718 = vmax.f32 %v1302, 0.0
        %v1719 = vmax.f32 %v1303, 0.0
        %v1720 = vmax.f32 %v1304, 0.0
        %v1721 = vmax.f32 %v1305, 0.0
        %v1722 = vmax.f32 %v1306, 0.0
        %v1723 = vmax.f32 %v1307, 0.0
        %v1724 = vmax.f32 %v1308, 0.0
        %v1725 = vmax.f32 %v1309, 0.0
        %v1726 = vmax.f32 %v1310, 0.0
        %v1727 = vmax.f32 %v1311, 0.0
        %v1728 = vmax.f32 %v1312, 0.0
        %v1729 = vmax.f32 %v1313, 0.0
        %v1730 = vmax.f32 %v1314, 0.0
        %v1731 = vmax.f32 %v1315, 0.0
        %v1732 = vmax.f32 %v1316, 0.0
        %v1733 = vmax.f32 %v1317, 0.0
        %v1734 = vmax.f32 %v1318, 0.0
        %v1735 = vmax.f32 %v1319, 0.0
        %v1736 = vmax.f32 %v1320, 0.0
        %v1737 = vmax.f32 %v1321, 0.0
        %v1738 = vmax.f32 %v1322, 0.0
        %v1739 = vmax.f32 %v1323, 0.0
        %v1740 = vmax.f32 %v1324, 0.0
        %v1741 = vmax.f32 %v1325, 0.0
        %v1742 = vmax.f32 %v1326, 0.0
        %v1743 = vmax.f32 %v1327, 0.0
        %v1744 = vmax.f32 %v1328, 0.0
        %v1745 = vmax.f32 %v1329, 0.0
        %v1746 = vmax.f32 %v1330, 0.0
        %v1747 = vmax.f32 %v1331, 0.0
        %v1748 = vmax.f32 %v1332, 0.0
        %v1749 = vmax.f32 %v1333, 0.0
        %v1750 = vmax.f32 %v1334, 0.0
        %v1751 = vmax.f32 %v1335, 0.0
        %v1752 = vmax.f32 %v1336, 0.0
        %v1753 = vmax.f32 %v1337, 0.0
        %v1754 = vmax.f32 %v1338, 0.0
        %v1755 = vmax.f32 %v1339, 0.0
        %v1756 = vmax.f32 %v1340, 0.0
        %v1757 = vmax.f32 %v1341, 0.0
        %v1758 = vmax.f32 %v1342, 0.0
        %v1759 = vmax.f32 %v1343, 0.0
        %v1760 = vmax.f32 %v1344, 0.0
        %v1761 = vmax.f32 %v1345, 0.0
        %v1762 = vmax.f32 %v1346, 0.0
        %v1763 = vmax.f32 %v1347, 0.0
        %v1764 = vmax.f32 %v1348, 0.0
        %v1765 = vmax.f32 %v1349, 0.0
        %v1766 = vmax.f32 %v1350, 0.0
        %v1767 = vmax.f32 %v1351, 0.0
        %v1768 = vmax.f32 %v1352, 0.0
        %v1769 = vmax.f32 %v1353, 0.0
        %v1770 = vmax.f32 %v1354, 0.0
        %v1771 = vmax.f32 %v1355, 0.0
        %v1772 = vmax.f32 %v1356, 0.0
        %v1773 = vmax.f32 %v1357, 0.0
        %v1774 = vmax.f32 %v1358, 0.0
        %v1775 = vmax.f32 %v1359, 0.0
        %v1776 = vmax.f32 %v1360, 0.0
        %v1777 = vmax.f32 %v1361, 0.0
        %v1778 = vmax.f32 %v1362, 0.0
        %v1779 = vmax.f32 %v1363, 0.0
        %v1780 = vmax.f32 %v1364, 0.0
        %v1781 = vmax.f32 %v1365, 0.0
        %v1782 = vmax.f32 %v1366, 0.0
        %v1783 = vmax.f32 %v1367, 0.0
        %v1784 = vmax.f32 %v1368, 0.0
        %v1785 = vmax.f32 %v1369, 0.0
        %v1786 = vmax.f32 %v1370, 0.0
        %v1787 = vmax.f32 %v1371, 0.0
        %v1788 = vmax.f32 %v1372, 0.0
        %v1789 = vmax.f32 %v1373, 0.0
        %v1790 = vmax.f32 %v1374, 0.0
        %v1791 = vmax.f32 %v1375, 0.0
        %v1792 = vmax.f32 %v1376, 0.0
        %v1793 = vmax.f32 %v1377, 0.0
        %v1794 = vmax.f32 %v1378, 0.0
        %v1795 = vmax.f32 %v1379, 0.0
        %v1796 = vmax.f32 %v1380, 0.0
        %v1797 = vmax.f32 %v1381, 0.0
        %v1798 = vmax.f32 %v1382, 0.0
        %v1799 = vmax.f32 %v1383, 0.0
        %v1800 = vmax.f32 %v1384, 0.0
        %v1801 = vmax.f32 %v1385, 0.0
        %v1802 = vmax.f32 %v1386, 0.0
        %v1803 = vmax.f32 %v1387, 0.0
        %v1804 = vmax.f32 %v1388, 0.0
        %v1805 = vmax.f32 %v1389, 0.0
        %v1806 = vmax.f32 %v1390, 0.0
        %v1807 = vmax.f32 %v1391, 0.0
        %v1808 = vmax.f32 %v1392, 0.0
        %v1809 = vmax.f32 %v1393, 0.0
        %v1810 = vmax.f32 %v1394, 0.0
        %v1811 = vmax.f32 %v1395, 0.0
        %v1812 = vmax.f32 %v1396, 0.0
        %v1813 = vmax.f32 %v1397, 0.0
        %v1814 = vmax.f32 %v1398, 0.0
        %v1815 = vmax.f32 %v1399, 0.0
        %v1816 = vmax.f32 %v1400, 0.0
        %v1817 = vmax.f32 %v1401, 0.0
        %v1818 = vmax.f32 %v1402, 0.0
        %v1819 = vmax.f32 %v1403, 0.0
        %v1820 = vmax.f32 %v1404, 0.0
        %v1821 = vmax.f32 %v1405, 0.0
        %v1822 = vmax.f32 %v1406, 0.0
        %v1823 = vmax.f32 %v1407, 0.0
        %v1824 = vmax.f32 %v1408, 0.0
        %v1825 = vmax.f32 %v1409, 0.0
        %v1826 = vmax.f32 %v1410, 0.0
        %v1827 = vmax.f32 %v1411, 0.0
        %v1828 = vmax.f32 %v1412, 0.0
        %v1829 = vmax.f32 %v1413, 0.0
        %v1830 = vmax.f32 %v1414, 0.0
        %v1831 = vmax.f32 %v1415, 0.0
        %v1832 = vmax.f32 %v1416, 0.0
        %v1833 = vmax.f32 %v1417, 0.0
        %v1834 = vmax.f32 %v1418, 0.0
        %v1835 = vmax.f32 %v1419, 0.0
        %v1836 = vmax.f32 %v1420, 0.0
        %v1837 = vmax.f32 %v1421, 0.0
        %v1838 = vmax.f32 %v1422, 0.0
        %v1839 = vmax.f32 %v1423, 0.0
        %v1840 = vmax.f32 %v1424, 0.0
        %v1841 = vmax.f32 %v1425, 0.0
        %v1842 = vmax.f32 %v1426, 0.0
        %v1843 = vmax.f32 %v1427, 0.0
        %v1844 = vmax.f32 %v1428, 0.0
        %v1845 = vmax.f32 %v1429, 0.0
        %v1846 = vmax.f32 %v1430, 0.0
        %v1847 = vmax.f32 %v1431, 0.0
        %v1848 = vmax.f32 %v1432, 0.0
        %v1849 = vmax.f32 %v1433, 0.0
        %v1850 = vmax.f32 %v1434, 0.0
        %v1851 = vmax.f32 %v1435, 0.0
        %v1852 = vmax.f32 %v1436, 0.0
        %v1853 = vmax.f32 %v1437, 0.0
        %v1854 = vmax.f32 %v1438, 0.0
        %v1855 = vmax.f32 %v1439, 0.0
        %v1856 = vmax.f32 %v1440, 0.0
        %v1857 = vmax.f32 %v1441, 0.0
        %v1858 = vmax.f32 %v1442, 0.0
        %v1859 = vmax.f32 %v1443, 0.0
        %v1860 = vmax.f32 %v1444, 0.0
        %v1861 = vmax.f32 %v1445, 0.0
        %v1862 = vmax.f32 %v1446, 0.0
        %v1863 = vmax.f32 %v1447, 0.0
        %v1864 = vmax.f32 %v1448, 0.0
        %v1865 = vmax.f32 %v1449, 0.0
        %v1866 = vmax.f32 %v1450, 0.0
        %v1867 = vmax.f32 %v1451, 0.0
        %v1868 = vmax.f32 %v1452, 0.0
        %v1869 = vmax.f32 %v1453, 0.0
        %v1870 = vmax.f32 %v1454, 0.0
        %v1871 = vmax.f32 %v1455, 0.0
        %v1872 = vmax.f32 %v1456, 0.0
        %v1873 = vmax.f32 %v1457, 0.0
        %v1874 = vmax.f32 %v1458, 0.0
        %v1875 = vmax.f32 %v1459, 0.0
        %v1876 = vmax.f32 %v1460, 0.0
        %v1877 = vmax.f32 %v1461, 0.0
        %v1878 = vmax.f32 %v1462, 0.0
        %v1879 = vmax.f32 %v1463, 0.0
        %v1880 = vmax.f32 %v1464, 0.0
        %v1881 = vmax.f32 %v1465, 0.0
        %v1882 = vmax.f32 %v1466, 0.0
        %v1883 = vmax.f32 %v1467, 0.0
        %v1884 = vmax.f32 %v1468, 0.0
        %v1885 = vmax.f32 %v1469, 0.0
        %v1886 = vmax.f32 %v1470, 0.0
        %v1887 = vmax.f32 %v1471, 0.0
        %v1888 = vmax.f32 %v1472, 0.0
        %v1889 = vmax.f32 %v1473, 0.0
        %v1890 = vmax.f32 %v1474, 0.0
        %v1891 = vmax.f32 %v1475, 0.0
        %v1892 = vmax.f32 %v1476, 0.0
        %v1893 = vmax.f32 %v1477, 0.0
        %v1894 = vmax.f32 %v1478, 0.0
        %v1895 = vmax.f32 %v1479, 0.0
        %v1896 = vmax.f32 %v1480, 0.0
        %v1897 = vmax.f32 %v1481, 0.0
        %v1898 = vmax.f32 %v1482, 0.0
        %v1899 = vmax.f32 %v1483, 0.0
        %1900 = vst [vmem:[%s217] sm:$0xff] %v1484
        %1901 = vst [vmem:[%s217 + $0x8] sm:$0xff] %v1485
        %1902 = vst [vmem:[%s217 + $0x10] sm:$0xff] %v1486
        %1903 = vst [vmem:[%s217 + $0x18] sm:$0xff] %v1487
        %1904 = vst [vmem:[%s217 + $0x20] sm:$0xff] %v1488
        %1905 = vst [vmem:[%s217 + $0x28] sm:$0xff] %v1489
        %1906 = vst [vmem:[%s217 + $0x30] sm:$0xff] %v1490
        %1907 = vst [vmem:[%s217 + $0x38] sm:$0xff] %v1491
        %1908 = vst [vmem:[%s217 + $0x40] sm:$0xff] %v1492
        %1909 = vst [vmem:[%s217 + $0x48] sm:$0xff] %v1493
        %1910 = vst [vmem:[%s217 + $0x50] sm:$0xff] %v1494
        %1911 = vst [vmem:[%s217 + $0x58] sm:$0xff] %v1495
        %1912 = vst [vmem:[%s217 + $0x60] sm:$0xff] %v1496
        %1913 = vst [vmem:[%s217 + $0x68] sm:$0xff] %v1497
        %1914 = vst [vmem:[%s217 + $0x70] sm:$0xff] %v1498
        %1915 = vst [vmem:[%s217 + $0x78] sm:$0xff] %v1499
        %1916 = vst [vmem:[%s217 + $0x80] sm:$0xff] %v1500
        %1917 = vst [vmem:[%s217 + $0x88] sm:$0xff] %v1501
        %1918 = vst [vmem:[%s217 + $0x90] sm:$0xff] %v1502
        %1919 = vst [vmem:[%s217 + $0x98] sm:$0xff] %v1503
        %1920 = vst [vmem:[%s217 + $0xa0] sm:$0xff] %v1504
        %1921 = vst [vmem:[%s217 + $0xa8] sm:$0xff] %v1505
        %1922 = vst [vmem:[%s217 + $0xb0] sm:$0xff] %v1506
        %1923 = vst [vmem:[%s217 + $0xb8] sm:$0xff] %v1507
        %1924 = vst [vmem:[%s217 + $0xc0] sm:$0xff] %v1508
        %1925 = vst [vmem:[%s217 + $0xc8] sm:$0xff] %v1509
        %1926 = vst [vmem:[%s217 + $0xd0] sm:$0xff] %v1510
        %1927 = vst [vmem:[%s217 + $0xd8] sm:$0xff] %v1511
        %1928 = vst [vmem:[%s217 + $0xe0] sm:$0xff] %v1512
        %1929 = vst [vmem:[%s217 + $0xe8] sm:$0xff] %v1513
        %1930 = vst [vmem:[%s217 + $0xf0] sm:$0xff] %v1514
        %1931 = vst [vmem:[%s217 + $0xf8] sm:$0xff] %v1515
        %1932 = vst [vmem:[%s217 + $0x100] sm:$0xff] %v1516
        %1933 = vst [vmem:[%s217 + $0x108] sm:$0xff] %v1517
        %1934 = vst [vmem:[%s217 + $0x110] sm:$0xff] %v1518
        %1935 = vst [vmem:[%s217 + $0x118] sm:$0xff] %v1519
        %1936 = vst [vmem:[%s217 + $0x120] sm:$0xff] %v1520
        %1937 = vst [vmem:[%s217 + $0x128] sm:$0xff] %v1521
        %1938 = vst [vmem:[%s217 + $0x130] sm:$0xff] %v1522
        %1939 = vst [vmem:[%s217 + $0x138] sm:$0xff] %v1523
        %1940 = vst [vmem:[%s217 + $0x140] sm:$0xff] %v1524
        %1941 = vst [vmem:[%s217 + $0x148] sm:$0xff] %v1525
        %1942 = vst [vmem:[%s217 + $0x150] sm:$0xff] %v1526
        %1943 = vst [vmem:[%s217 + $0x158] sm:$0xff] %v1527
        %1944 = vst [vmem:[%s217 + $0x160] sm:$0xff] %v1528
        %1945 = vst [vmem:[%s217 + $0x168] sm:$0xff] %v1529
        %1946 = vst [vmem:[%s217 + $0x170] sm:$0xff] %v1530
        %1947 = vst [vmem:[%s217 + $0x178] sm:$0xff] %v1531
        %1948 = vst [vmem:[%s217 + $0x180] sm:$0xff] %v1532
        %1949 = vst [vmem:[%s217 + $0x188] sm:$0xff] %v1533
        %1950 = vst [vmem:[%s217 + $0x190] sm:$0xff] %v1534
        %1951 = vst [vmem:[%s217 + $0x198] sm:$0xff] %v1535
        %1952 = vst [vmem:[%s217 + $0x1a0] sm:$0xff] %v1536
        %1953 = vst [vmem:[%s217 + $0x1a8] sm:$0xff] %v1537
        %1954 = vst [vmem:[%s217 + $0x1b0] sm:$0xff] %v1538
        %1955 = vst [vmem:[%s217 + $0x1b8] sm:$0xff] %v1539
        %1956 = vst [vmem:[%s217 + $0x1c0] sm:$0xff] %v1540
        %1957 = vst [vmem:[%s217 + $0x1c8] sm:$0xff] %v1541
        %1958 = vst [vmem:[%s217 + $0x1d0] sm:$0xff] %v1542
        %1959 = vst [vmem:[%s217 + $0x1d8] sm:$0xff] %v1543
        %1960 = vst [vmem:[%s217 + $0x1e0] sm:$0xff] %v1544
        %1961 = vst [vmem:[%s217 + $0x1e8] sm:$0xff] %v1545
        %1962 = vst [vmem:[%s217 + $0x1f0] sm:$0xff] %v1546
        %1963 = vst [vmem:[%s217 + $0x1f8] sm:$0xff] %v1547
        %1964 = vst [vmem:[%s217 + $0x200] sm:$0xff] %v1548
        %1965 = vst [vmem:[%s217 + $0x208] sm:$0xff] %v1549
        %1966 = vst [vmem:[%s217 + $0x210] sm:$0xff] %v1550
        %1967 = vst [vmem:[%s217 + $0x218] sm:$0xff] %v1551
        %1968 = vst [vmem:[%s217 + $0x220] sm:$0xff] %v1552
        %1969 = vst [vmem:[%s217 + $0x228] sm:$0xff] %v1553
        %1970 = vst [vmem:[%s217 + $0x230] sm:$0xff] %v1554
        %1971 = vst [vmem:[%s217 + $0x238] sm:$0xff] %v1555
        %1972 = vst [vmem:[%s217 + $0x240] sm:$0xff] %v1556
        %1973 = vst [vmem:[%s217 + $0x248] sm:$0xff] %v1557
        %1974 = vst [vmem:[%s217 + $0x250] sm:$0xff] %v1558
        %1975 = vst [vmem:[%s217 + $0x258] sm:$0xff] %v1559
        %1976 = vst [vmem:[%s217 + $0x260] sm:$0xff] %v1560
        %1977 = vst [vmem:[%s217 + $0x268] sm:$0xff] %v1561
        %1978 = vst [vmem:[%s217 + $0x270] sm:$0xff] %v1562
        %1979 = vst [vmem:[%s217 + $0x278] sm:$0xff] %v1563
        %1980 = vst [vmem:[%s217 + $0x280] sm:$0xff] %v1564
        %1981 = vst [vmem:[%s217 + $0x288] sm:$0xff] %v1565
        %1982 = vst [vmem:[%s217 + $0x290] sm:$0xff] %v1566
        %1983 = vst [vmem:[%s217 + $0x298] sm:$0xff] %v1567
        %1984 = vst [vmem:[%s217 + $0x2a0] sm:$0xff] %v1568
        %1985 = vst [vmem:[%s217 + $0x2a8] sm:$0xff] %v1569
        %1986 = vst [vmem:[%s217 + $0x2b0] sm:$0xff] %v1570
        %1987 = vst [vmem:[%s217 + $0x2b8] sm:$0xff] %v1571
        %1988 = vst [vmem:[%s217 + $0x2c0] sm:$0xff] %v1572
        %1989 = vst [vmem:[%s217 + $0x2c8] sm:$0xff] %v1573
        %1990 = vst [vmem:[%s217 + $0x2d0] sm:$0xff] %v1574
        %1991 = vst [vmem:[%s217 + $0x2d8] sm:$0xff] %v1575
        %1992 = vst [vmem:[%s217 + $0x2e0] sm:$0xff] %v1576
        %1993 = vst [vmem:[%s217 + $0x2e8] sm:$0xff] %v1577
        %1994 = vst [vmem:[%s217 + $0x2f0] sm:$0xff] %v1578
        %1995 = vst [vmem:[%s217 + $0x2f8] sm:$0xff] %v1579
        %1996 = vst [vmem:[%s217 + $0x300] sm:$0xff] %v1580
        %1997 = vst [vmem:[%s217 + $0x308] sm:$0xff] %v1581
        %1998 = vst [vmem:[%s217 + $0x310] sm:$0xff] %v1582
        %1999 = vst [vmem:[%s217 + $0x318] sm:$0xff] %v1583
        %2000 = vst [vmem:[%s217 + $0x320] sm:$0xff] %v1584
        %2001 = vst [vmem:[%s217 + $0x328] sm:$0xff] %v1585
        %2002 = vst [vmem:[%s217 + $0x330] sm:$0xff] %v1586
        %2003 = vst [vmem:[%s217 + $0x338] sm:$0xff] %v1587
        %2004 = vst [vmem:[%s217 + $0x340] sm:$0xff] %v1588
        %2005 = vst [vmem:[%s217 + $0x348] sm:$0xff] %v1589
        %2006 = vst [vmem:[%s217 + $0x350] sm:$0xff] %v1590
        %2007 = vst [vmem:[%s217 + $0x358] sm:$0xff] %v1591
        %2008 = vst [vmem:[%s217 + $0x360] sm:$0xff] %v1592
        %2009 = vst [vmem:[%s217 + $0x368] sm:$0xff] %v1593
        %2010 = vst [vmem:[%s217 + $0x370] sm:$0xff] %v1594
        %2011 = vst [vmem:[%s217 + $0x378] sm:$0xff] %v1595
        %2012 = vst [vmem:[%s217 + $0x380] sm:$0xff] %v1596
        %2013 = vst [vmem:[%s217 + $0x388] sm:$0xff] %v1597
        %2014 = vst [vmem:[%s217 + $0x390] sm:$0xff] %v1598
        %2015 = vst [vmem:[%s217 + $0x398] sm:$0xff] %v1599
        %2016 = vst [vmem:[%s217 + $0x3a0] sm:$0xff] %v1600
        %2017 = vst [vmem:[%s217 + $0x3a8] sm:$0xff] %v1601
        %2018 = vst [vmem:[%s217 + $0x3b0] sm:$0xff] %v1602
        %2019 = vst [vmem:[%s217 + $0x3b8] sm:$0xff] %v1603
        %2020 = vst [vmem:[%s217 + $0x3c0] sm:$0xff] %v1604
        %2021 = vst [vmem:[%s217 + $0x3c8] sm:$0xff] %v1605
        %2022 = vst [vmem:[%s217 + $0x3d0] sm:$0xff] %v1606
        %2023 = vst [vmem:[%s217 + $0x3d8] sm:$0xff] %v1607
        %2024 = vst [vmem:[%s217 + $0x3e0] sm:$0xff] %v1608
        %2025 = vst [vmem:[%s217 + $0x3e8] sm:$0xff] %v1609
        %2026 = vst [vmem:[%s217 + $0x3f0] sm:$0xff] %v1610
        %2027 = vst [vmem:[%s217 + $0x3f8] sm:$0xff] %v1611
        %2028 = vst [vmem:[%s217 + $0x400] sm:$0xff] %v1612
        %2029 = vst [vmem:[%s217 + $0x408] sm:$0xff] %v1613
        %2030 = vst [vmem:[%s217 + $0x410] sm:$0xff] %v1614
        %2031 = vst [vmem:[%s217 + $0x418] sm:$0xff] %v1615
        %2032 = vst [vmem:[%s217 + $0x420] sm:$0xff] %v1616
        %2033 = vst [vmem:[%s217 + $0x428] sm:$0xff] %v1617
        %2034 = vst [vmem:[%s217 + $0x430] sm:$0xff] %v1618
        %2035 = vst [vmem:[%s217 + $0x438] sm:$0xff] %v1619
        %2036 = vst [vmem:[%s217 + $0x440] sm:$0xff] %v1620
        %2037 = vst [vmem:[%s217 + $0x448] sm:$0xff] %v1621
        %2038 = vst [vmem:[%s217 + $0x450] sm:$0xff] %v1622
        %2039 = vst [vmem:[%s217 + $0x458] sm:$0xff] %v1623
        %2040 = vst [vmem:[%s217 + $0x460] sm:$0xff] %v1624
        %2041 = vst [vmem:[%s217 + $0x468] sm:$0xff] %v1625
        %2042 = vst [vmem:[%s217 + $0x470] sm:$0xff] %v1626
        %2043 = vst [vmem:[%s217 + $0x478] sm:$0xff] %v1627
        %2044 = vst [vmem:[%s217 + $0x480] sm:$0xff] %v1628
        %2045 = vst [vmem:[%s217 + $0x488] sm:$0xff] %v1629
        %2046 = vst [vmem:[%s217 + $0x490] sm:$0xff] %v1630
        %2047 = vst [vmem:[%s217 + $0x498] sm:$0xff] %v1631
        %2048 = vst [vmem:[%s217 + $0x4a0] sm:$0xff] %v1632
        %2049 = vst [vmem:[%s217 + $0x4a8] sm:$0xff] %v1633
        %2050 = vst [vmem:[%s217 + $0x4b0] sm:$0xff] %v1634
        %2051 = vst [vmem:[%s217 + $0x4b8] sm:$0xff] %v1635
        %2052 = vst [vmem:[%s217 + $0x4c0] sm:$0xff] %v1636
        %2053 = vst [vmem:[%s217 + $0x4c8] sm:$0xff] %v1637
        %2054 = vst [vmem:[%s217 + $0x4d0] sm:$0xff] %v1638
        %2055 = vst [vmem:[%s217 + $0x4d8] sm:$0xff] %v1639
        %2056 = vst [vmem:[%s217 + $0x4e0] sm:$0xff] %v1640
        %2057 = vst [vmem:[%s217 + $0x4e8] sm:$0xff] %v1641
        %2058 = vst [vmem:[%s217 + $0x4f0] sm:$0xff] %v1642
        %2059 = vst [vmem:[%s217 + $0x4f8] sm:$0xff] %v1643
        %2060 = vst [vmem:[%s217 + $0x500] sm:$0xff] %v1644
        %2061 = vst [vmem:[%s217 + $0x508] sm:$0xff] %v1645
        %2062 = vst [vmem:[%s217 + $0x510] sm:$0xff] %v1646
        %2063 = vst [vmem:[%s217 + $0x518] sm:$0xff] %v1647
        %2064 = vst [vmem:[%s217 + $0x520] sm:$0xff] %v1648
        %2065 = vst [vmem:[%s217 + $0x528] sm:$0xff] %v1649
        %2066 = vst [vmem:[%s217 + $0x530] sm:$0xff] %v1650
        %2067 = vst [vmem:[%s217 + $0x538] sm:$0xff] %v1651
        %2068 = vst [vmem:[%s217 + $0x540] sm:$0xff] %v1652
        %2069 = vst [vmem:[%s217 + $0x548] sm:$0xff] %v1653
        %2070 = vst [vmem:[%s217 + $0x550] sm:$0xff] %v1654
        %2071 = vst [vmem:[%s217 + $0x558] sm:$0xff] %v1655
        %2072 = vst [vmem:[%s217 + $0x560] sm:$0xff] %v1656
        %2073 = vst [vmem:[%s217 + $0x568] sm:$0xff] %v1657
        %2074 = vst [vmem:[%s217 + $0x570] sm:$0xff] %v1658
        %2075 = vst [vmem:[%s217 + $0x578] sm:$0xff] %v1659
        %2076 = vst [vmem:[%s217 + $0x580] sm:$0xff] %v1660
        %2077 = vst [vmem:[%s217 + $0x588] sm:$0xff] %v1661
        %2078 = vst [vmem:[%s217 + $0x590] sm:$0xff] %v1662
        %2079 = vst [vmem:[%s217 + $0x598] sm:$0xff] %v1663
        %2080 = vst [vmem:[%s217 + $0x5a0] sm:$0xff] %v1664
        %2081 = vst [vmem:[%s217 + $0x5a8] sm:$0xff] %v1665
        %2082 = vst [vmem:[%s217 + $0x5b0] sm:$0xff] %v1666
        %2083 = vst [vmem:[%s217 + $0x5b8] sm:$0xff] %v1667
        %2084 = vst [vmem:[%s217 + $0x5c0] sm:$0xff] %v1668
        %2085 = vst [vmem:[%s217 + $0x5c8] sm:$0xff] %v1669
        %2086 = vst [vmem:[%s217 + $0x5d0] sm:$0xff] %v1670
        %2087 = vst [vmem:[%s217 + $0x5d8] sm:$0xff] %v1671
        %2088 = vst [vmem:[%s217 + $0x5e0] sm:$0xff] %v1672
        %2089 = vst [vmem:[%s217 + $0x5e8] sm:$0xff] %v1673
        %2090 = vst [vmem:[%s217 + $0x5f0] sm:$0xff] %v1674
        %2091 = vst [vmem:[%s217 + $0x5f8] sm:$0xff] %v1675
        %2092 = vst [vmem:[%s217 + $0x600] sm:$0xff] %v1676
        %2093 = vst [vmem:[%s217 + $0x608] sm:$0xff] %v1677
        %2094 = vst [vmem:[%s217 + $0x610] sm:$0xff] %v1678
        %2095 = vst [vmem:[%s217 + $0x618] sm:$0xff] %v1679
        %2096 = vst [vmem:[%s217 + $0x620] sm:$0xff] %v1680
        %2097 = vst [vmem:[%s217 + $0x628] sm:$0xff] %v1681
        %2098 = vst [vmem:[%s217 + $0x630] sm:$0xff] %v1682
        %2099 = vst [vmem:[%s217 + $0x638] sm:$0xff] %v1683
        %2100 = vst [vmem:[%s217 + $0x640] sm:$0xff] %v1684
        %2101 = vst [vmem:[%s217 + $0x648] sm:$0xff] %v1685
        %2102 = vst [vmem:[%s217 + $0x650] sm:$0xff] %v1686
        %2103 = vst [vmem:[%s217 + $0x658] sm:$0xff] %v1687
        %2104 = vst [vmem:[%s217 + $0x660] sm:$0xff] %v1688
        %2105 = vst [vmem:[%s217 + $0x668] sm:$0xff] %v1689
        %2106 = vst [vmem:[%s217 + $0x670] sm:$0xff] %v1690
        %2107 = vst [vmem:[%s217 + $0x678] sm:$0xff] %v1691
        %2108 = vst [vmem:[%s217 + $0x680] sm:$0xff] %v1692
        %2109 = vst [vmem:[%s217 + $0x688] sm:$0xff] %v1693
        %2110 = vst [vmem:[%s217 + $0x690] sm:$0xff] %v1694
        %2111 = vst [vmem:[%s217 + $0x698] sm:$0xff] %v1695
        %2112 = vst [vmem:[%s217 + $0x6a0] sm:$0xff] %v1696
        %2113 = vst [vmem:[%s217 + $0x6a8] sm:$0xff] %v1697
        %2114 = vst [vmem:[%s217 + $0x6b0] sm:$0xff] %v1698
        %2115 = vst [vmem:[%s217 + $0x6b8] sm:$0xff] %v1699
        %2116 = vst [vmem:[%s217 + $0x6c0] sm:$0xff] %v1700
        %2117 = vst [vmem:[%s217 + $0x6c8] sm:$0xff] %v1701
        %2118 = vst [vmem:[%s217 + $0x6d0] sm:$0xff] %v1702
        %2119 = vst [vmem:[%s217 + $0x6d8] sm:$0xff] %v1703
        %2120 = vst [vmem:[%s217 + $0x6e0] sm:$0xff] %v1704
        %2121 = vst [vmem:[%s217 + $0x6e8] sm:$0xff] %v1705
        %2122 = vst [vmem:[%s217 + $0x6f0] sm:$0xff] %v1706
        %2123 = vst [vmem:[%s217 + $0x6f8] sm:$0xff] %v1707
        %2124 = vst [vmem:[%s217 + $0x700] sm:$0xff] %v1708
        %2125 = vst [vmem:[%s217 + $0x708] sm:$0xff] %v1709
        %2126 = vst [vmem:[%s217 + $0x710] sm:$0xff] %v1710
        %2127 = vst [vmem:[%s217 + $0x718] sm:$0xff] %v1711
        %2128 = vst [vmem:[%s217 + $0x720] sm:$0xff] %v1712
        %2129 = vst [vmem:[%s217 + $0x728] sm:$0xff] %v1713
        %2130 = vst [vmem:[%s217 + $0x730] sm:$0xff] %v1714
        %2131 = vst [vmem:[%s217 + $0x738] sm:$0xff] %v1715
        %2132 = vst [vmem:[%s217 + $0x740] sm:$0xff] %v1716
        %2133 = vst [vmem:[%s217 + $0x748] sm:$0xff] %v1717
        %2134 = vst [vmem:[%s217 + $0x750] sm:$0xff] %v1718
        %2135 = vst [vmem:[%s217 + $0x758] sm:$0xff] %v1719
        %2136 = vst [vmem:[%s217 + $0x760] sm:$0xff] %v1720
        %2137 = vst [vmem:[%s217 + $0x768] sm:$0xff] %v1721
        %2138 = vst [vmem:[%s217 + $0x770] sm:$0xff] %v1722
        %2139 = vst [vmem:[%s217 + $0x778] sm:$0xff] %v1723
        %2140 = vst [vmem:[%s217 + $0x780] sm:$0xff] %v1724
        %2141 = vst [vmem:[%s217 + $0x788] sm:$0xff] %v1725
        %2142 = vst [vmem:[%s217 + $0x790] sm:$0xff] %v1726
        %2143 = vst [vmem:[%s217 + $0x798] sm:$0xff] %v1727
        %2144 = vst [vmem:[%s217 + $0x7a0] sm:$0xff] %v1728
        %2145 = vst [vmem:[%s217 + $0x7a8] sm:$0xff] %v1729
        %2146 = vst [vmem:[%s217 + $0x7b0] sm:$0xff] %v1730
        %2147 = vst [vmem:[%s217 + $0x7b8] sm:$0xff] %v1731
        %2148 = vst [vmem:[%s217 + $0x7c0] sm:$0xff] %v1732
        %2149 = vst [vmem:[%s217 + $0x7c8] sm:$0xff] %v1733
        %2150 = vst [vmem:[%s217 + $0x7d0] sm:$0xff] %v1734
        %2151 = vst [vmem:[%s217 + $0x7d8] sm:$0xff] %v1735
        %2152 = vst [vmem:[%s217 + $0x7e0] sm:$0xff] %v1736
        %2153 = vst [vmem:[%s217 + $0x7e8] sm:$0xff] %v1737
        %2154 = vst [vmem:[%s217 + $0x7f0] sm:$0xff] %v1738
        %2155 = vst [vmem:[%s217 + $0x7f8] sm:$0xff] %v1739
        %2156 = vst [vmem:[%s217 + $0x800] sm:$0xff] %v1740
        %2157 = vst [vmem:[%s217 + $0x808] sm:$0xff] %v1741
        %2158 = vst [vmem:[%s217 + $0x810] sm:$0xff] %v1742
        %2159 = vst [vmem:[%s217 + $0x818] sm:$0xff] %v1743
        %2160 = vst [vmem:[%s217 + $0x820] sm:$0xff] %v1744
        %2161 = vst [vmem:[%s217 + $0x828] sm:$0xff] %v1745
        %2162 = vst [vmem:[%s217 + $0x830] sm:$0xff] %v1746
        %2163 = vst [vmem:[%s217 + $0x838] sm:$0xff] %v1747
        %2164 = vst [vmem:[%s217 + $0x840] sm:$0xff] %v1748
        %2165 = vst [vmem:[%s217 + $0x848] sm:$0xff] %v1749
        %2166 = vst [vmem:[%s217 + $0x850] sm:$0xff] %v1750
        %2167 = vst [vmem:[%s217 + $0x858] sm:$0xff] %v1751
        %2168 = vst [vmem:[%s217 + $0x860] sm:$0xff] %v1752
        %2169 = vst [vmem:[%s217 + $0x868] sm:$0xff] %v1753
        %2170 = vst [vmem:[%s217 + $0x870] sm:$0xff] %v1754
        %2171 = vst [vmem:[%s217 + $0x878] sm:$0xff] %v1755
        %2172 = vst [vmem:[%s217 + $0x880] sm:$0xff] %v1756
        %2173 = vst [vmem:[%s217 + $0x888] sm:$0xff] %v1757
        %2174 = vst [vmem:[%s217 + $0x890] sm:$0xff] %v1758
        %2175 = vst [vmem:[%s217 + $0x898] sm:$0xff] %v1759
        %2176 = vst [vmem:[%s217 + $0x8a0] sm:$0xff] %v1760
        %2177 = vst [vmem:[%s217 + $0x8a8] sm:$0xff] %v1761
        %2178 = vst [vmem:[%s217 + $0x8b0] sm:$0xff] %v1762
        %2179 = vst [vmem:[%s217 + $0x8b8] sm:$0xff] %v1763
        %2180 = vst [vmem:[%s217 + $0x8c0] sm:$0xff] %v1764
        %2181 = vst [vmem:[%s217 + $0x8c8] sm:$0xff] %v1765
        %2182 = vst [vmem:[%s217 + $0x8d0] sm:$0xff] %v1766
        %2183 = vst [vmem:[%s217 + $0x8d8] sm:$0xff] %v1767
        %2184 = vst [vmem:[%s217 + $0x8e0] sm:$0xff] %v1768
        %2185 = vst [vmem:[%s217 + $0x8e8] sm:$0xff] %v1769
        %2186 = vst [vmem:[%s217 + $0x8f0] sm:$0xff] %v1770
        %2187 = vst [vmem:[%s217 + $0x8f8] sm:$0xff] %v1771
        %2188 = vst [vmem:[%s217 + $0x900] sm:$0xff] %v1772
        %2189 = vst [vmem:[%s217 + $0x908] sm:$0xff] %v1773
        %2190 = vst [vmem:[%s217 + $0x910] sm:$0xff] %v1774
        %2191 = vst [vmem:[%s217 + $0x918] sm:$0xff] %v1775
        %2192 = vst [vmem:[%s217 + $0x920] sm:$0xff] %v1776
        %2193 = vst [vmem:[%s217 + $0x928] sm:$0xff] %v1777
        %2194 = vst [vmem:[%s217 + $0x930] sm:$0xff] %v1778
        %2195 = vst [vmem:[%s217 + $0x938] sm:$0xff] %v1779
        %2196 = vst [vmem:[%s217 + $0x940] sm:$0xff] %v1780
        %2197 = vst [vmem:[%s217 + $0x948] sm:$0xff] %v1781
        %2198 = vst [vmem:[%s217 + $0x950] sm:$0xff] %v1782
        %2199 = vst [vmem:[%s217 + $0x958] sm:$0xff] %v1783
        %2200 = vst [vmem:[%s217 + $0x960] sm:$0xff] %v1784
        %2201 = vst [vmem:[%s217 + $0x968] sm:$0xff] %v1785
        %2202 = vst [vmem:[%s217 + $0x970] sm:$0xff] %v1786
        %2203 = vst [vmem:[%s217 + $0x978] sm:$0xff] %v1787
        %2204 = vst [vmem:[%s217 + $0x980] sm:$0xff] %v1788
        %2205 = vst [vmem:[%s217 + $0x988] sm:$0xff] %v1789
        %2206 = vst [vmem:[%s217 + $0x990] sm:$0xff] %v1790
        %2207 = vst [vmem:[%s217 + $0x998] sm:$0xff] %v1791
        %2208 = vst [vmem:[%s217 + $0x9a0] sm:$0xff] %v1792
        %2209 = vst [vmem:[%s217 + $0x9a8] sm:$0xff] %v1793
        %2210 = vst [vmem:[%s217 + $0x9b0] sm:$0xff] %v1794
        %2211 = vst [vmem:[%s217 + $0x9b8] sm:$0xff] %v1795
        %2212 = vst [vmem:[%s217 + $0x9c0] sm:$0xff] %v1796
        %2213 = vst [vmem:[%s217 + $0x9c8] sm:$0xff] %v1797
        %2214 = vst [vmem:[%s217 + $0x9d0] sm:$0xff] %v1798
        %2215 = vst [vmem:[%s217 + $0x9d8] sm:$0xff] %v1799
        %2216 = vst [vmem:[%s217 + $0x9e0] sm:$0xff] %v1800
        %2217 = vst [vmem:[%s217 + $0x9e8] sm:$0xff] %v1801
        %2218 = vst [vmem:[%s217 + $0x9f0] sm:$0xff] %v1802
        %2219 = vst [vmem:[%s217 + $0x9f8] sm:$0xff] %v1803
        %2220 = vst [vmem:[%s217 + $0xa00] sm:$0xff] %v1804
        %2221 = vst [vmem:[%s217 + $0xa08] sm:$0xff] %v1805
        %2222 = vst [vmem:[%s217 + $0xa10] sm:$0xff] %v1806
        %2223 = vst [vmem:[%s217 + $0xa18] sm:$0xff] %v1807
        %2224 = vst [vmem:[%s217 + $0xa20] sm:$0xff] %v1808
        %2225 = vst [vmem:[%s217 + $0xa28] sm:$0xff] %v1809
        %2226 = vst [vmem:[%s217 + $0xa30] sm:$0xff] %v1810
        %2227 = vst [vmem:[%s217 + $0xa38] sm:$0xff] %v1811
        %2228 = vst [vmem:[%s217 + $0xa40] sm:$0xff] %v1812
        %2229 = vst [vmem:[%s217 + $0xa48] sm:$0xff] %v1813
        %2230 = vst [vmem:[%s217 + $0xa50] sm:$0xff] %v1814
        %2231 = vst [vmem:[%s217 + $0xa58] sm:$0xff] %v1815
        %2232 = vst [vmem:[%s217 + $0xa60] sm:$0xff] %v1816
        %2233 = vst [vmem:[%s217 + $0xa68] sm:$0xff] %v1817
        %2234 = vst [vmem:[%s217 + $0xa70] sm:$0xff] %v1818
        %2235 = vst [vmem:[%s217 + $0xa78] sm:$0xff] %v1819
        %2236 = vst [vmem:[%s217 + $0xa80] sm:$0xff] %v1820
        %2237 = vst [vmem:[%s217 + $0xa88] sm:$0xff] %v1821
        %2238 = vst [vmem:[%s217 + $0xa90] sm:$0xff] %v1822
        %2239 = vst [vmem:[%s217 + $0xa98] sm:$0xff] %v1823
        %2240 = vst [vmem:[%s217 + $0xaa0] sm:$0xff] %v1824
        %2241 = vst [vmem:[%s217 + $0xaa8] sm:$0xff] %v1825
        %2242 = vst [vmem:[%s217 + $0xab0] sm:$0xff] %v1826
        %2243 = vst [vmem:[%s217 + $0xab8] sm:$0xff] %v1827
        %2244 = vst [vmem:[%s217 + $0xac0] sm:$0xff] %v1828
        %2245 = vst [vmem:[%s217 + $0xac8] sm:$0xff] %v1829
        %2246 = vst [vmem:[%s217 + $0xad0] sm:$0xff] %v1830
        %2247 = vst [vmem:[%s217 + $0xad8] sm:$0xff] %v1831
        %2248 = vst [vmem:[%s217 + $0xae0] sm:$0xff] %v1832
        %2249 = vst [vmem:[%s217 + $0xae8] sm:$0xff] %v1833
        %2250 = vst [vmem:[%s217 + $0xaf0] sm:$0xff] %v1834
        %2251 = vst [vmem:[%s217 + $0xaf8] sm:$0xff] %v1835
        %2252 = vst [vmem:[%s217 + $0xb00] sm:$0xff] %v1836
        %2253 = vst [vmem:[%s217 + $0xb08] sm:$0xff] %v1837
        %2254 = vst [vmem:[%s217 + $0xb10] sm:$0xff] %v1838
        %2255 = vst [vmem:[%s217 + $0xb18] sm:$0xff] %v1839
        %2256 = vst [vmem:[%s217 + $0xb20] sm:$0xff] %v1840
        %2257 = vst [vmem:[%s217 + $0xb28] sm:$0xff] %v1841
        %2258 = vst [vmem:[%s217 + $0xb30] sm:$0xff] %v1842
        %2259 = vst [vmem:[%s217 + $0xb38] sm:$0xff] %v1843
        %2260 = vst [vmem:[%s217 + $0xb40] sm:$0xff] %v1844
        %2261 = vst [vmem:[%s217 + $0xb48] sm:$0xff] %v1845
        %2262 = vst [vmem:[%s217 + $0xb50] sm:$0xff] %v1846
        %2263 = vst [vmem:[%s217 + $0xb58] sm:$0xff] %v1847
        %2264 = vst [vmem:[%s217 + $0xb60] sm:$0xff] %v1848
        %2265 = vst [vmem:[%s217 + $0xb68] sm:$0xff] %v1849
        %2266 = vst [vmem:[%s217 + $0xb70] sm:$0xff] %v1850
        %2267 = vst [vmem:[%s217 + $0xb78] sm:$0xff] %v1851
        %2268 = vst [vmem:[%s217 + $0xb80] sm:$0xff] %v1852
        %2269 = vst [vmem:[%s217 + $0xb88] sm:$0xff] %v1853
        %2270 = vst [vmem:[%s217 + $0xb90] sm:$0xff] %v1854
        %2271 = vst [vmem:[%s217 + $0xb98] sm:$0xff] %v1855
        %2272 = vst [vmem:[%s217 + $0xba0] sm:$0xff] %v1856
        %2273 = vst [vmem:[%s217 + $0xba8] sm:$0xff] %v1857
        %2274 = vst [vmem:[%s217 + $0xbb0] sm:$0xff] %v1858
        %2275 = vst [vmem:[%s217 + $0xbb8] sm:$0xff] %v1859
        %2276 = vst [vmem:[%s217 + $0xbc0] sm:$0xff] %v1860
        %2277 = vst [vmem:[%s217 + $0xbc8] sm:$0xff] %v1861
        %2278 = vst [vmem:[%s217 + $0xbd0] sm:$0xff] %v1862
        %2279 = vst [vmem:[%s217 + $0xbd8] sm:$0xff] %v1863
        %2280 = vst [vmem:[%s217 + $0xbe0] sm:$0xff] %v1864
        %2281 = vst [vmem:[%s217 + $0xbe8] sm:$0xff] %v1865
        %2282 = vst [vmem:[%s217 + $0xbf0] sm:$0xff] %v1866
        %2283 = vst [vmem:[%s217 + $0xbf8] sm:$0xff] %v1867
        %2284 = vst [vmem:[%s217 + $0xc00] sm:$0xff] %v1868
        %2285 = vst [vmem:[%s217 + $0xc08] sm:$0xff] %v1869
        %2286 = vst [vmem:[%s217 + $0xc10] sm:$0xff] %v1870
        %2287 = vst [vmem:[%s217 + $0xc18] sm:$0xff] %v1871
        %2288 = vst [vmem:[%s217 + $0xc20] sm:$0xff] %v1872
        %2289 = vst [vmem:[%s217 + $0xc28] sm:$0xff] %v1873
        %2290 = vst [vmem:[%s217 + $0xc30] sm:$0xff] %v1874
        %2291 = vst [vmem:[%s217 + $0xc38] sm:$0xff] %v1875
        %2292 = vst [vmem:[%s217 + $0xc40] sm:$0xff] %v1876
        %2293 = vst [vmem:[%s217 + $0xc48] sm:$0xff] %v1877
        %2294 = vst [vmem:[%s217 + $0xc50] sm:$0xff] %v1878
        %2295 = vst [vmem:[%s217 + $0xc58] sm:$0xff] %v1879
        %2296 = vst [vmem:[%s217 + $0xc60] sm:$0xff] %v1880
        %2297 = vst [vmem:[%s217 + $0xc68] sm:$0xff] %v1881
        %2298 = vst [vmem:[%s217 + $0xc70] sm:$0xff] %v1882
        %2299 = vst [vmem:[%s217 + $0xc78] sm:$0xff] %v1883
        %2300 = vst [vmem:[%s217 + $0xc80] sm:$0xff] %v1884
        %2301 = vst [vmem:[%s217 + $0xc88] sm:$0xff] %v1885
        %2302 = vst [vmem:[%s217 + $0xc90] sm:$0xff] %v1886
        %2303 = vst [vmem:[%s217 + $0xc98] sm:$0xff] %v1887
        %2304 = vst [vmem:[%s217 + $0xca0] sm:$0xff] %v1888
        %2305 = vst [vmem:[%s217 + $0xca8] sm:$0xff] %v1889
        %2306 = vst [vmem:[%s217 + $0xcb0] sm:$0xff] %v1890
        %2307 = vst [vmem:[%s217 + $0xcb8] sm:$0xff] %v1891
        %2308 = vst [vmem:[%s217 + $0xcc0] sm:$0xff] %v1892
        %2309 = vst [vmem:[%s217 + $0xcc8] sm:$0xff] %v1893
        %2310 = vst [vmem:[%s217 + $0xcd0] sm:$0xff] %v1894
        %2311 = vst [vmem:[%s217 + $0xcd8] sm:$0xff] %v1895
        %2312 = vst [vmem:[%s217 + $0xce0] sm:$0xff] %v1896
        %2313 = vst [vmem:[%s217 + $0xce8] sm:$0xff] %v1897
        %2314 = vst [vmem:[%s217 + $0xcf0] sm:$0xff] %v1898
        %2315 = vst [vmem:[%s217 + $0xcf8] sm:$0xff] %v1899
        %s2316 = sand.u32 %s82, 1
        %s2317 = scalar_lea.sflag [#allocation4], %s2316
        %s2318 = sand.u32 %s82, 1
        %s2319 = smul.addr %s2318, 3328
        %s2320 = scalar_lea.vmem [#allocation7], %s2319
        // Predicated region
        $region37: #{tpu_custom_call.1} parent=27 // pred_check
          %p2321 = pneg %p92
        $region38: #{tpu_custom_call.1} parent=27 // pred_check_branch
          %2323 = sbr.rel (%p2321) target = $region40
        $region39: #{tpu_custom_call.1} parent=27 // pred_region
          %s2324 = smul.u32 13, %s22
          %s2325 = ssub.s32 25, %s2324
          %p2326 = scmp.lt.s32.totalorder %s2325, 13
          %s2327 = scalar_select %p2326, %s2325, 13
          %s2328 = smul.u32 128, %s2327
          %s2329 = smul.u32 %s2328, 32
          %s2331 = ssub.s32 53248, %s2329
          %2332 = vsyncadd %s2317, %s2331
          %p2333 = scmp.ne.s32.totalorder 0, %s2329
          %s2334 = smul.addr %s2324, 32
          %s2335 = smul.addr %s2334, 128
          %s2336 = scalar_lea.hbm %s2, %s2335
          %s2337 = smul.u32 256, %s2327
          %s2338 = sshll.u32 %s2320, 4
          %s2339 = int_to_ptr.vmem [resolvable:$true] %s2338
          %s2340 = sshll.u32 %s2337, 4
          %2344 = dma.vmem_to_hbm [thread:$0]  (%p2333), %s2339, %s2340, %s2336, %s2317, 4096, 4096, 256
        $region40: #{tpu_custom_call.1} parent=27 // pred_fallthru
          _
      $region28: #{tpu_custom_call.1} parent=5 // pred_fallthru
        _
      %p2345 = scmp.le.s32.totalorder 2, %s17
      // Predicated region
      $region41: #{tpu_custom_call.1} parent=5 // pred_check
        %p2346 = pneg %p2345
      $region42: #{tpu_custom_call.1} parent=5 // pred_check_branch
        %2348 = sbr.rel (%p2346) target = $region44
      $region43: #{tpu_custom_call.1} parent=5 // pred_region
        %s2349 = ssub.s32 %s17, 2
        // Predicated region
        $region45: #{tpu_custom_call.1} parent=43 // pred_check
          %p2350 = pneg %p98
        $region46: #{tpu_custom_call.1} parent=43 // pred_check_branch
          %2352 = sbr.rel (%p2350) target = $region48
        $region47: #{tpu_custom_call.1} parent=43 // pred_region
          %s2353 = sand.u32 %s83, 1
          %s2354 = scalar_lea.sflag [#allocation4], %s2353
          %s2355 = sand.u32 %s83, 1
          %s2356 = smul.addr %s2355, 3328
          %s2357 = scalar_lea.vmem [#allocation7], %s2356
          %2358 = dma.done %s2354, 53248
        $region48: #{tpu_custom_call.1} parent=43 // pred_fallthru
          _
      $region44: #{tpu_custom_call.1} parent=5 // pred_fallthru
        _
    $region6: #{tpu_custom_call.1} parent=1 // loop_footer
      %s21 = sadd.s32 1, %s17
    $region7: #{tpu_custom_call.1} parent=1 // loop_footer_branch
      %16 = sbr.rel target = $region3
    $region8: #{tpu_custom_call.1} parent=1 // loop_exit
      _
    %2359 = vsyncpa [#allocation3], 1
    %s2360 = scalar_lea.sflag [#allocation3], 1
    %2361 = vsyncpa %s2360, 1
    %2362 = vsyncpa [#allocation6], 1
    %s2363 = scalar_lea.sflag [#allocation6], 1
    %2364 = vsyncpa %s2363, 1
    %2365 = vsyncpa [#allocation4], 1
    %s2366 = scalar_lea.sflag [#allocation4], 1
    %2367 = vsyncpa %s2366, 1

</llo_original>
